<compile_context>
chip_gen: v7x
topology: tpu7x:2x2x1
jax: 0.10.0
libtpu: 0.0.40
codegen_flags: <defaults>
</compile_context>

<pallas_src>
import functools

import jax
import jax.numpy as jnp
from jax import lax
from jax.experimental import pallas as pl
from jax.experimental.pallas import tpu as pltpu

_NEG = -1e30   # finite "-inf" for masked logits: exp(_NEG - m) underflows to exactly 0
_EPS = 1e-12   # matches torch.nn.functional.normalize eps


def _l2_normalize(x):
    # torch F.normalize(x, dim=1): x / max(||x||, eps).
    # rsqrt(max(sumsq, eps^2)) == 1 / max(||x||, eps) (sqrt is monotone); EUP, not VALU.
    ss = jnp.sum(x * x, axis=1, keepdims=True)
    return x * lax.rsqrt(jnp.maximum(ss, _EPS * _EPS))


def genre_contrastive_kernel(v_ref, a_ref, va_ref, g_ref, out_ref, *,
                             temperature, weights, valid_b, use_bf16_mxu):
    Bp = g_ref.shape[0]
    inv_t = 1.0 / temperature
    padded = valid_b != Bp   # static Python bool -> compile-time branch

    # Normalized genre features stay resident for all three panels.
    g_n = _l2_normalize(g_ref[...].astype(jnp.float32))
    if use_bf16_mxu:
        g_mm = g_n.astype(jnp.bfloat16)
        g_d = g_mm.astype(jnp.float32)    # diag sees the same rounding as the MXU
    else:
        g_mm = g_d = g_n

    if padded:
        ri = lax.broadcasted_iota(jnp.int32, (Bp, Bp), 0)
        ci = lax.broadcasted_iota(jnp.int32, (Bp, Bp), 1)
        invalid = jnp.logical_or(ri >= valid_b, ci >= valid_b)

    loss = jnp.float32(0.0)
    for f_ref, w in zip((v_ref, a_ref, va_ref), weights):
        f_n = _l2_normalize(f_ref[...].astype(jnp.float32))
        if use_bf16_mxu:
            f_mm = f_n.astype(jnp.bfloat16)
            f_d = f_mm.astype(jnp.float32)
        else:
            f_mm = f_d = f_n

        # S = f_n @ g_n.T / t, contracting dim 1 of both (no transpose materialized).
        S = lax.dot_general(f_mm, g_mm, (((1,), (1,)), ((), ())),
                            preferred_element_type=jnp.float32) * inv_t    # (Bp, Bp)
        if padded:
            S = jnp.where(invalid, _NEG, S)

        # ONE exp per panel; a single panel-global max shift feeds both LSE directions.
        m = jnp.max(S, keepdims=True)                  # (1, 1)
        e = jnp.exp(S - m)                             # padded entries -> exactly 0
        row_sum = jnp.sum(e, axis=1, keepdims=True)    # (Bp, 1)  lane reduce
        col_sum = jnp.sum(e, axis=0, keepdims=True)    # (1, Bp)  sublane reduce
        # TODO(synk): if a v6e/v7x bundle dump shows the 2 XLUs saturating on the
        # axis=0 reduce, compute col_sum as ones(1,Bp) @ e on the (idle) MXU instead.

        if padded:
            # Padded rows/cols have exactly zero exp-sums; drop them from the sums.
            sum_lr = jnp.sum(jnp.where(
                row_sum > 0.0, m + jnp.log(jnp.maximum(row_sum, 1e-37)), 0.0))
            sum_lc = jnp.sum(jnp.where(
                col_sum > 0.0, m + jnp.log(jnp.maximum(col_sum, 1e-37)), 0.0))
        else:
            sum_lr = jnp.sum(m + jnp.log(row_sum))
            sum_lc = jnp.sum(m + jnp.log(col_sum))

        # Diagonal via O(B*D) row-wise dot of the (rounded) normalized features;
        # padded rows are exactly zero, so the full sum equals the valid-row sum.
        sum_d = jnp.sum(f_d * g_d) * inv_t

        # bilateral InfoNCE = mean(lse_row - diag) + mean(lse_col - diag)
        loss = loss + w * ((sum_lr + sum_lc - 2.0 * sum_d) / valid_b)

    out_ref[0, 0] = loss


def _round_up(x, m):
    return ((x + m - 1) // m) * m


def _pad2d(x, rows, cols):
    r, c = x.shape
    if (r, c) == (rows, cols):
        return x
    return jnp.pad(x, ((0, rows - r), (0, cols - c)))


def genre_contrastive_loss(visual, audio, va_fusion, genres,
                           temperature=0.1, v_g_weight=1.0, a_g_weight=1.0,
                           va_g_weight=1.0, use_bf16_mxu=True, pad_lanes=True):
    B, D = visual.shape

    # Genre-token mean folded to a sum in XLA (the 1/T factor cancels under L2
    # normalization), so the kernel only DMAs a (B, D) tensor, never (B, T, D).
    g_sum = jnp.sum(genres.astype(jnp.float32), axis=1)                    # (B, D)

    if pad_lanes:
        # Zero-pad to lane-dense shapes: zero columns leave norms/dots unchanged;
        # zero (padded) rows are masked out of the LSEs/means inside the kernel.
        Dp = _round_up(max(D, 128), 128)
        Bp = _round_up(max(B, 128), 128)
    else:
        Dp, Bp = D, B

    v_p = _pad2d(visual.astype(jnp.float32), Bp, Dp)
    a_p = _pad2d(audio.astype(jnp.float32), Bp, Dp)
    va_p = _pad2d(va_fusion.astype(jnp.float32), Bp, Dp)
    g_p = _pad2d(g_sum, Bp, Dp)

    kernel = functools.partial(
        genre_contrastive_kernel,
        temperature=float(temperature),
        weights=(float(v_g_weight), float(a_g_weight), float(va_g_weight)),
        valid_b=int(B),
        use_bf16_mxu=bool(use_bf16_mxu),
    )
    spec = pl.BlockSpec((Bp, Dp), lambda: (0, 0))
    out = pl.pallas_call(
        kernel,
        out_shape=jax.ShapeDtypeStruct((1, 1), jnp.float32),
        in_specs=[spec, spec, spec, spec],
        out_specs=pl.BlockSpec(memory_space=pltpu.MemorySpace.SMEM),
    )(v_p, a_p, va_p, g_p)
    return out[0, 0]


def _reference(visual, audio, va_fusion, genres, temperature=0.1):
    # pure-JAX reference of the PyTorch module (for a sanity check)
    g = jnp.mean(genres, axis=1)

    def norm(x):
        return x / jnp.maximum(jnp.linalg.norm(x, axis=1, keepdims=True), 1e-12)

    def info_nce(f1, f2):
        S = (norm(f1) @ norm(f2).T) / temperature
        B = S.shape[0]
        lse = jax.scipy.special.logsumexp(S, axis=1)
        diag = S[jnp.arange(B), jnp.arange(B)]
        return jnp.mean(lse - diag)

    def bilateral(f):
        return info_nce(f, g) + info_nce(g, f)

    return bilateral(visual) + bilateral(audio) + bilateral(va_fusion)


if __name__ == "__main__":
    B, T, D = 8, 4, 32  # batch, genre tokens, feature dim

    key = jax.random.PRNGKey(0)
    k1, k2, k3, k4 = jax.random.split(key, 4)
    visual = jax.random.normal(k1, (B, D), dtype=jnp.float32)
    audio = jax.random.normal(k2, (B, D), dtype=jnp.float32)
    va_fusion = jax.random.normal(k3, (B, D), dtype=jnp.float32)
    genres = jax.random.normal(k4, (B, T, D), dtype=jnp.float32)

    ref = _reference(visual, audio, va_fusion, genres)

    # 1) exact-math path (f32 MXU), lane-padded + masked code path, tight tolerance
    loss_f32 = jax.block_until_ready(
        genre_contrastive_loss(visual, audio, va_fusion, genres, use_bf16_mxu=False))
    assert jnp.allclose(loss_f32, ref, rtol=1e-4, atol=1e-4), (loss_f32, ref)

    # 2) exact-math path without padding (covers the unmasked branch)
    loss_nopad = jax.block_until_ready(
        genre_contrastive_loss(visual, audio, va_fusion, genres,
                               use_bf16_mxu=False, pad_lanes=False))
    assert jnp.allclose(loss_nopad, ref, rtol=1e-4, atol=1e-4), (loss_nopad, ref)

    # 3) default path: bf16 MXU operands (everything else f32).  /0.1 temperature
    #    amplifies the bf16 logit rounding ~10x, hence the looser tolerance.
    loss_def = jax.block_until_ready(
        genre_contrastive_loss(visual, audio, va_fusion, genres))
    assert jnp.allclose(loss_def, ref, rtol=2e-2, atol=2e-2), (loss_def, ref)

    print("KERNEL_OK")
</pallas_src>

<mosaic_0001>
module attributes {stable_mosaic.version = 11 : i64} {
  func.func @genre_contrastive_kernel(%arg0: memref<128x128xf32, #tpu.memory_space<vmem>>, %arg1: memref<128x128xf32, #tpu.memory_space<vmem>>, %arg2: memref<128x128xf32, #tpu.memory_space<vmem>>, %arg3: memref<128x128xf32, #tpu.memory_space<vmem>>, %arg4: memref<1x1xf32, #tpu.memory_space<smem>>) attributes {dimension_semantics = [], scalar_prefetch = 0 : i64, scratch_operands = 0 : i64, tpu.core_type = #tpu.core_type<tc>} {
    %c0 = arith.constant 0 : index
    %c0_0 = arith.constant 0 : index
    %0 = vector.load %arg3[%c0, %c0_0] : memref<128x128xf32, #tpu.memory_space<vmem>>, vector<128x128xf32>
    %1 = arith.mulf %0, %0 : vector<128x128xf32>
    %cst = arith.constant dense<0.000000e+00> : vector<128xf32>
    %2 = vector.multi_reduction <add>, %1, %cst [1] : vector<128x128xf32> to vector<128xf32>
    %3 = vector.shape_cast %2 : vector<128xf32> to vector<128x1xf32>
    %cst_1 = arith.constant 1.000000e-24 : f32
    %4 = vector.broadcast %cst_1 : f32 to vector<128x1xf32>
    %5 = arith.maximumf %3, %4 : vector<128x1xf32>
    %6 = math.rsqrt %5 : vector<128x1xf32>
    %7 = vector.broadcast %6 : vector<128x1xf32> to vector<128x128xf32>
    %8 = arith.mulf %0, %7 : vector<128x128xf32>
    %9 = tpu.iota {dimensions = array<i32: 0>} : vector<128x128xi32>
    %10 = tpu.iota {dimensions = array<i32: 1>} : vector<128x128xi32>
    %c8_i32 = arith.constant 8 : i32
    %11 = vector.broadcast %c8_i32 : i32 to vector<128x128xi32>
    %12 = arith.cmpi sge, %9, %11 : vector<128x128xi32>
    %c8_i32_2 = arith.constant 8 : i32
    %13 = vector.broadcast %c8_i32_2 : i32 to vector<128x128xi32>
    %14 = arith.cmpi sge, %10, %13 : vector<128x128xi32>
    %15 = arith.ori %12, %14 : vector<128x128xi1>
    %c0_3 = arith.constant 0 : index
    %c0_4 = arith.constant 0 : index
    %16 = vector.load %arg0[%c0_3, %c0_4] : memref<128x128xf32, #tpu.memory_space<vmem>>, vector<128x128xf32>
    %17 = arith.mulf %16, %16 : vector<128x128xf32>
    %cst_5 = arith.constant dense<0.000000e+00> : vector<128xf32>
    %18 = vector.multi_reduction <add>, %17, %cst_5 [1] : vector<128x128xf32> to vector<128xf32>
    %19 = vector.shape_cast %18 : vector<128xf32> to vector<128x1xf32>
    %cst_6 = arith.constant 1.000000e-24 : f32
    %20 = vector.broadcast %cst_6 : f32 to vector<128x1xf32>
    %21 = arith.maximumf %19, %20 : vector<128x1xf32>
    %22 = math.rsqrt %21 : vector<128x1xf32>
    %23 = vector.broadcast %22 : vector<128x1xf32> to vector<128x128xf32>
    %24 = arith.mulf %16, %23 : vector<128x128xf32>
    %cst_7 = arith.constant dense<0.000000e+00> : vector<128x128xf32>
    %25 = tpu.matmul %24, %8, %cst_7 {dimension_numbers = #tpu.dot_dimension_numbers<[1], [1], [0], [0], [0, 0, 1, 0], [], []>} : vector<128x128xf32>, vector<128x128xf32>, vector<128x128xf32> -> vector<128x128xf32>
    %cst_8 = arith.constant 1.000000e+01 : f32
    %26 = vector.broadcast %cst_8 : f32 to vector<128x128xf32>
    %27 = arith.mulf %25, %26 : vector<128x128xf32>
    %cst_9 = arith.constant -1.000000e+30 : f32
    %28 = vector.broadcast %cst_9 : f32 to vector<128x128xf32>
    %29 = arith.select %15, %28, %27 : vector<128x128xi1>, vector<128x128xf32>
    %30 = vector.shape_cast %29 : vector<128x128xf32> to vector<1x128x128xf32>
    %cst_10 = arith.constant dense<0xFF800000> : vector<1xf32>
    %31 = vector.multi_reduction <maximumf>, %30, %cst_10 [1, 2] : vector<1x128x128xf32> to vector<1xf32>
    %32 = vector.shape_cast %31 : vector<1xf32> to vector<1x1x1xf32>
    %33 = vector.extract %32[0, 0, 0] : f32 from vector<1x1x1xf32>
    %34 = vector.broadcast %33 : f32 to vector<1x1xf32>
    %35 = vector.broadcast %34 : vector<1x1xf32> to vector<128x128xf32>
    %36 = arith.subf %29, %35 : vector<128x128xf32>
    %37 = math.exp %36 : vector<128x128xf32>
    %cst_11 = arith.constant dense<0.000000e+00> : vector<128xf32>
    %38 = vector.multi_reduction <add>, %37, %cst_11 [1] : vector<128x128xf32> to vector<128xf32>
    %39 = vector.shape_cast %38 : vector<128xf32> to vector<128x1xf32>
    %cst_12 = arith.constant dense<0.000000e+00> : vector<128xf32>
    %40 = vector.multi_reduction <add>, %37, %cst_12 [0] : vector<128x128xf32> to vector<128xf32>
    %41 = vector.shape_cast %40 : vector<128xf32> to vector<1x128xf32>
    %cst_13 = arith.constant 0.000000e+00 : f32
    %42 = vector.broadcast %cst_13 : f32 to vector<128x1xf32>
    %43 = arith.cmpf ogt, %39, %42 : vector<128x1xf32>
    %cst_14 = arith.constant 9.99999991E-38 : f32
    %44 = vector.broadcast %cst_14 : f32 to vector<128x1xf32>
    %45 = arith.maximumf %39, %44 : vector<128x1xf32>
    %46 = math.log %45 : vector<128x1xf32>
    %47 = vector.broadcast %34 : vector<1x1xf32> to vector<128x1xf32>
    %48 = arith.addf %47, %46 : vector<128x1xf32>
    %cst_15 = arith.constant 0.000000e+00 : f32
    %49 = vector.broadcast %cst_15 : f32 to vector<128x1xf32>
    %50 = arith.select %43, %48, %49 : vector<128x1xi1>, vector<128x1xf32>
    %51 = vector.shape_cast %50 : vector<128x1xf32> to vector<1x128x1xf32>
    %cst_16 = arith.constant dense<0.000000e+00> : vector<1xf32>
    %52 = vector.multi_reduction <add>, %51, %cst_16 [1, 2] : vector<1x128x1xf32> to vector<1xf32>
    %53 = vector.shape_cast %52 : vector<1xf32> to vector<1x1x1xf32>
    %54 = vector.extract %53[0, 0, 0] : f32 from vector<1x1x1xf32>
    %cst_17 = arith.constant 0.000000e+00 : f32
    %55 = vector.broadcast %cst_17 : f32 to vector<1x128xf32>
    %56 = arith.cmpf ogt, %41, %55 : vector<1x128xf32>
    %cst_18 = arith.constant 9.99999991E-38 : f32
    %57 = vector.broadcast %cst_18 : f32 to vector<1x128xf32>
    %58 = arith.maximumf %41, %57 : vector<1x128xf32>
    %59 = math.log %58 : vector<1x128xf32>
    %60 = vector.broadcast %34 : vector<1x1xf32> to vector<1x128xf32>
    %61 = arith.addf %60, %59 : vector<1x128xf32>
    %cst_19 = arith.constant 0.000000e+00 : f32
    %62 = vector.broadcast %cst_19 : f32 to vector<1x128xf32>
    %63 = arith.select %56, %61, %62 : vector<1x128xi1>, vector<1x128xf32>
    %64 = vector.shape_cast %63 : vector<1x128xf32> to vector<1x1x128xf32>
    %cst_20 = arith.constant dense<0.000000e+00> : vector<1xf32>
    %65 = vector.multi_reduction <add>, %64, %cst_20 [1, 2] : vector<1x1x128xf32> to vector<1xf32>
    %66 = vector.shape_cast %65 : vector<1xf32> to vector<1x1x1xf32>
    %67 = vector.extract %66[0, 0, 0] : f32 from vector<1x1x1xf32>
    %68 = arith.mulf %24, %8 : vector<128x128xf32>
    %69 = vector.shape_cast %68 : vector<128x128xf32> to vector<1x128x128xf32>
    %cst_21 = arith.constant dense<0.000000e+00> : vector<1xf32>
    %70 = vector.multi_reduction <add>, %69, %cst_21 [1, 2] : vector<1x128x128xf32> to vector<1xf32>
    %71 = vector.shape_cast %70 : vector<1xf32> to vector<1x1x1xf32>
    %72 = vector.extract %71[0, 0, 0] : f32 from vector<1x1x1xf32>
    %cst_22 = arith.constant 1.000000e+01 : f32
    %73 = arith.mulf %72, %cst_22 : f32
    %74 = arith.addf %54, %67 : f32
    %cst_23 = arith.constant 2.000000e+00 : f32
    %75 = arith.mulf %cst_23, %73 : f32
    %76 = arith.subf %74, %75 : f32
    %cst_24 = arith.constant 8.000000e+00 : f32
    %77 = arith.divf %76, %cst_24 : f32
    %cst_25 = arith.constant 1.000000e+00 : f32
    %78 = arith.mulf %cst_25, %77 : f32
    %cst_26 = arith.constant 0.000000e+00 : f32
    %79 = arith.addf %cst_26, %78 : f32
    %c0_27 = arith.constant 0 : index
    %c0_28 = arith.constant 0 : index
    %80 = vector.load %arg1[%c0_27, %c0_28] : memref<128x128xf32, #tpu.memory_space<vmem>>, vector<128x128xf32>
    %81 = arith.mulf %80, %80 : vector<128x128xf32>
    %cst_29 = arith.constant dense<0.000000e+00> : vector<128xf32>
    %82 = vector.multi_reduction <add>, %81, %cst_29 [1] : vector<128x128xf32> to vector<128xf32>
    %83 = vector.shape_cast %82 : vector<128xf32> to vector<128x1xf32>
    %cst_30 = arith.constant 1.000000e-24 : f32
    %84 = vector.broadcast %cst_30 : f32 to vector<128x1xf32>
    %85 = arith.maximumf %83, %84 : vector<128x1xf32>
    %86 = math.rsqrt %85 : vector<128x1xf32>
    %87 = vector.broadcast %86 : vector<128x1xf32> to vector<128x128xf32>
    %88 = arith.mulf %80, %87 : vector<128x128xf32>
    %cst_31 = arith.constant dense<0.000000e+00> : vector<128x128xf32>
    %89 = tpu.matmul %88, %8, %cst_31 {dimension_numbers = #tpu.dot_dimension_numbers<[1], [1], [0], [0], [0, 0, 1, 0], [], []>} : vector<128x128xf32>, vector<128x128xf32>, vector<128x128xf32> -> vector<128x128xf32>
    %cst_32 = arith.constant 1.000000e+01 : f32
    %90 = vector.broadcast %cst_32 : f32 to vector<128x128xf32>
    %91 = arith.mulf %89, %90 : vector<128x128xf32>
    %cst_33 = arith.constant -1.000000e+30 : f32
    %92 = vector.broadcast %cst_33 : f32 to vector<128x128xf32>
    %93 = arith.select %15, %92, %91 : vector<128x128xi1>, vector<128x128xf32>
    %94 = vector.shape_cast %93 : vector<128x128xf32> to vector<1x128x128xf32>
    %cst_34 = arith.constant dense<0xFF800000> : vector<1xf32>
    %95 = vector.multi_reduction <maximumf>, %94, %cst_34 [1, 2] : vector<1x128x128xf32> to vector<1xf32>
    %96 = vector.shape_cast %95 : vector<1xf32> to vector<1x1x1xf32>
    %97 = vector.extract %96[0, 0, 0] : f32 from vector<1x1x1xf32>
    %98 = vector.broadcast %97 : f32 to vector<1x1xf32>
    %99 = vector.broadcast %98 : vector<1x1xf32> to vector<128x128xf32>
    %100 = arith.subf %93, %99 : vector<128x128xf32>
    %101 = math.exp %100 : vector<128x128xf32>
    %cst_35 = arith.constant dense<0.000000e+00> : vector<128xf32>
    %102 = vector.multi_reduction <add>, %101, %cst_35 [1] : vector<128x128xf32> to vector<128xf32>
    %103 = vector.shape_cast %102 : vector<128xf32> to vector<128x1xf32>
    %cst_36 = arith.constant dense<0.000000e+00> : vector<128xf32>
    %104 = vector.multi_reduction <add>, %101, %cst_36 [0] : vector<128x128xf32> to vector<128xf32>
    %105 = vector.shape_cast %104 : vector<128xf32> to vector<1x128xf32>
    %cst_37 = arith.constant 0.000000e+00 : f32
    %106 = vector.broadcast %cst_37 : f32 to vector<128x1xf32>
    %107 = arith.cmpf ogt, %103, %106 : vector<128x1xf32>
    %cst_38 = arith.constant 9.99999991E-38 : f32
    %108 = vector.broadcast %cst_38 : f32 to vector<128x1xf32>
    %109 = arith.maximumf %103, %108 : vector<128x1xf32>
    %110 = math.log %109 : vector<128x1xf32>
    %111 = vector.broadcast %98 : vector<1x1xf32> to vector<128x1xf32>
    %112 = arith.addf %111, %110 : vector<128x1xf32>
    %cst_39 = arith.constant 0.000000e+00 : f32
    %113 = vector.broadcast %cst_39 : f32 to vector<128x1xf32>
    %114 = arith.select %107, %112, %113 : vector<128x1xi1>, vector<128x1xf32>
    %115 = vector.shape_cast %114 : vector<128x1xf32> to vector<1x128x1xf32>
    %cst_40 = arith.constant dense<0.000000e+00> : vector<1xf32>
    %116 = vector.multi_reduction <add>, %115, %cst_40 [1, 2] : vector<1x128x1xf32> to vector<1xf32>
    %117 = vector.shape_cast %116 : vector<1xf32> to vector<1x1x1xf32>
    %118 = vector.extract %117[0, 0, 0] : f32 from vector<1x1x1xf32>
    %cst_41 = arith.constant 0.000000e+00 : f32
    %119 = vector.broadcast %cst_41 : f32 to vector<1x128xf32>
    %120 = arith.cmpf ogt, %105, %119 : vector<1x128xf32>
    %cst_42 = arith.constant 9.99999991E-38 : f32
    %121 = vector.broadcast %cst_42 : f32 to vector<1x128xf32>
    %122 = arith.maximumf %105, %121 : vector<1x128xf32>
    %123 = math.log %122 : vector<1x128xf32>
    %124 = vector.broadcast %98 : vector<1x1xf32> to vector<1x128xf32>
    %125 = arith.addf %124, %123 : vector<1x128xf32>
    %cst_43 = arith.constant 0.000000e+00 : f32
    %126 = vector.broadcast %cst_43 : f32 to vector<1x128xf32>
    %127 = arith.select %120, %125, %126 : vector<1x128xi1>, vector<1x128xf32>
    %128 = vector.shape_cast %127 : vector<1x128xf32> to vector<1x1x128xf32>
    %cst_44 = arith.constant dense<0.000000e+00> : vector<1xf32>
    %129 = vector.multi_reduction <add>, %128, %cst_44 [1, 2] : vector<1x1x128xf32> to vector<1xf32>
    %130 = vector.shape_cast %129 : vector<1xf32> to vector<1x1x1xf32>
    %131 = vector.extract %130[0, 0, 0] : f32 from vector<1x1x1xf32>
    %132 = arith.mulf %88, %8 : vector<128x128xf32>
    %133 = vector.shape_cast %132 : vector<128x128xf32> to vector<1x128x128xf32>
    %cst_45 = arith.constant dense<0.000000e+00> : vector<1xf32>
    %134 = vector.multi_reduction <add>, %133, %cst_45 [1, 2] : vector<1x128x128xf32> to vector<1xf32>
    %135 = vector.shape_cast %134 : vector<1xf32> to vector<1x1x1xf32>
    %136 = vector.extract %135[0, 0, 0] : f32 from vector<1x1x1xf32>
    %cst_46 = arith.constant 1.000000e+01 : f32
    %137 = arith.mulf %136, %cst_46 : f32
    %138 = arith.addf %118, %131 : f32
    %cst_47 = arith.constant 2.000000e+00 : f32
    %139 = arith.mulf %cst_47, %137 : f32
    %140 = arith.subf %138, %139 : f32
    %cst_48 = arith.constant 8.000000e+00 : f32
    %141 = arith.divf %140, %cst_48 : f32
    %cst_49 = arith.constant 1.000000e+00 : f32
    %142 = arith.mulf %cst_49, %141 : f32
    %143 = arith.addf %79, %142 : f32
    %c0_50 = arith.constant 0 : index
    %c0_51 = arith.constant 0 : index
    %144 = vector.load %arg2[%c0_50, %c0_51] : memref<128x128xf32, #tpu.memory_space<vmem>>, vector<128x128xf32>
    %145 = arith.mulf %144, %144 : vector<128x128xf32>
    %cst_52 = arith.constant dense<0.000000e+00> : vector<128xf32>
    %146 = vector.multi_reduction <add>, %145, %cst_52 [1] : vector<128x128xf32> to vector<128xf32>
    %147 = vector.shape_cast %146 : vector<128xf32> to vector<128x1xf32>
    %cst_53 = arith.constant 1.000000e-24 : f32
    %148 = vector.broadcast %cst_53 : f32 to vector<128x1xf32>
    %149 = arith.maximumf %147, %148 : vector<128x1xf32>
    %150 = math.rsqrt %149 : vector<128x1xf32>
    %151 = vector.broadcast %150 : vector<128x1xf32> to vector<128x128xf32>
    %152 = arith.mulf %144, %151 : vector<128x128xf32>
    %cst_54 = arith.constant dense<0.000000e+00> : vector<128x128xf32>
    %153 = tpu.matmul %152, %8, %cst_54 {dimension_numbers = #tpu.dot_dimension_numbers<[1], [1], [0], [0], [0, 0, 1, 0], [], []>} : vector<128x128xf32>, vector<128x128xf32>, vector<128x128xf32> -> vector<128x128xf32>
    %cst_55 = arith.constant 1.000000e+01 : f32
    %154 = vector.broadcast %cst_55 : f32 to vector<128x128xf32>
    %155 = arith.mulf %153, %154 : vector<128x128xf32>
    %cst_56 = arith.constant -1.000000e+30 : f32
    %156 = vector.broadcast %cst_56 : f32 to vector<128x128xf32>
    %157 = arith.select %15, %156, %155 : vector<128x128xi1>, vector<128x128xf32>
    %158 = vector.shape_cast %157 : vector<128x128xf32> to vector<1x128x128xf32>
    %cst_57 = arith.constant dense<0xFF800000> : vector<1xf32>
    %159 = vector.multi_reduction <maximumf>, %158, %cst_57 [1, 2] : vector<1x128x128xf32> to vector<1xf32>
    %160 = vector.shape_cast %159 : vector<1xf32> to vector<1x1x1xf32>
    %161 = vector.extract %160[0, 0, 0] : f32 from vector<1x1x1xf32>
    %162 = vector.broadcast %161 : f32 to vector<1x1xf32>
    %163 = vector.broadcast %162 : vector<1x1xf32> to vector<128x128xf32>
    %164 = arith.subf %157, %163 : vector<128x128xf32>
    %165 = math.exp %164 : vector<128x128xf32>
    %cst_58 = arith.constant dense<0.000000e+00> : vector<128xf32>
    %166 = vector.multi_reduction <add>, %165, %cst_58 [1] : vector<128x128xf32> to vector<128xf32>
    %167 = vector.shape_cast %166 : vector<128xf32> to vector<128x1xf32>
    %cst_59 = arith.constant dense<0.000000e+00> : vector<128xf32>
    %168 = vector.multi_reduction <add>, %165, %cst_59 [0] : vector<128x128xf32> to vector<128xf32>
    %169 = vector.shape_cast %168 : vector<128xf32> to vector<1x128xf32>
    %cst_60 = arith.constant 0.000000e+00 : f32
    %170 = vector.broadcast %cst_60 : f32 to vector<128x1xf32>
    %171 = arith.cmpf ogt, %167, %170 : vector<128x1xf32>
    %cst_61 = arith.constant 9.99999991E-38 : f32
    %172 = vector.broadcast %cst_61 : f32 to vector<128x1xf32>
    %173 = arith.maximumf %167, %172 : vector<128x1xf32>
    %174 = math.log %173 : vector<128x1xf32>
    %175 = vector.broadcast %162 : vector<1x1xf32> to vector<128x1xf32>
    %176 = arith.addf %175, %174 : vector<128x1xf32>
    %cst_62 = arith.constant 0.000000e+00 : f32
    %177 = vector.broadcast %cst_62 : f32 to vector<128x1xf32>
    %178 = arith.select %171, %176, %177 : vector<128x1xi1>, vector<128x1xf32>
    %179 = vector.shape_cast %178 : vector<128x1xf32> to vector<1x128x1xf32>
    %cst_63 = arith.constant dense<0.000000e+00> : vector<1xf32>
    %180 = vector.multi_reduction <add>, %179, %cst_63 [1, 2] : vector<1x128x1xf32> to vector<1xf32>
    %181 = vector.shape_cast %180 : vector<1xf32> to vector<1x1x1xf32>
    %182 = vector.extract %181[0, 0, 0] : f32 from vector<1x1x1xf32>
    %cst_64 = arith.constant 0.000000e+00 : f32
    %183 = vector.broadcast %cst_64 : f32 to vector<1x128xf32>
    %184 = arith.cmpf ogt, %169, %183 : vector<1x128xf32>
    %cst_65 = arith.constant 9.99999991E-38 : f32
    %185 = vector.broadcast %cst_65 : f32 to vector<1x128xf32>
    %186 = arith.maximumf %169, %185 : vector<1x128xf32>
    %187 = math.log %186 : vector<1x128xf32>
    %188 = vector.broadcast %162 : vector<1x1xf32> to vector<1x128xf32>
    %189 = arith.addf %188, %187 : vector<1x128xf32>
    %cst_66 = arith.constant 0.000000e+00 : f32
    %190 = vector.broadcast %cst_66 : f32 to vector<1x128xf32>
    %191 = arith.select %184, %189, %190 : vector<1x128xi1>, vector<1x128xf32>
    %192 = vector.shape_cast %191 : vector<1x128xf32> to vector<1x1x128xf32>
    %cst_67 = arith.constant dense<0.000000e+00> : vector<1xf32>
    %193 = vector.multi_reduction <add>, %192, %cst_67 [1, 2] : vector<1x1x128xf32> to vector<1xf32>
    %194 = vector.shape_cast %193 : vector<1xf32> to vector<1x1x1xf32>
    %195 = vector.extract %194[0, 0, 0] : f32 from vector<1x1x1xf32>
    %196 = arith.mulf %152, %8 : vector<128x128xf32>
    %197 = vector.shape_cast %196 : vector<128x128xf32> to vector<1x128x128xf32>
    %cst_68 = arith.constant dense<0.000000e+00> : vector<1xf32>
    %198 = vector.multi_reduction <add>, %197, %cst_68 [1, 2] : vector<1x128x128xf32> to vector<1xf32>
    %199 = vector.shape_cast %198 : vector<1xf32> to vector<1x1x1xf32>
    %200 = vector.extract %199[0, 0, 0] : f32 from vector<1x1x1xf32>
    %cst_69 = arith.constant 1.000000e+01 : f32
    %201 = arith.mulf %200, %cst_69 : f32
    %202 = arith.addf %182, %195 : f32
    %cst_70 = arith.constant 2.000000e+00 : f32
    %203 = arith.mulf %cst_70, %201 : f32
    %204 = arith.subf %202, %203 : f32
    %cst_71 = arith.constant 8.000000e+00 : f32
    %205 = arith.divf %204, %cst_71 : f32
    %cst_72 = arith.constant 1.000000e+00 : f32
    %206 = arith.mulf %cst_72, %205 : f32
    %207 = arith.addf %143, %206 : f32
    %c0_73 = arith.constant 0 : index
    %c0_74 = arith.constant 0 : index
    %208 = memref.load %arg4[%c0_73, %c0_74] : memref<1x1xf32, #tpu.memory_space<smem>>
    memref.store %207, %arg4[%c0_73, %c0_74] : memref<1x1xf32, #tpu.memory_space<smem>>
    return
  }
}

</mosaic_0001>

<llo_original>
// kernel: tpu_custom_call.1
$region0: #{tpu_custom_call.1}
  #allocation0 [shape = 'u32[]', space=smem, size = 0x4, offset = 0x4, fixed_abs, tag = 'smem constant byte address 0x4 - core index']
  #allocation1 [shape = 'u32[144,128]{1,0:T(1,128)}', space=vmem, size = 0x12000, scoped, tag = 'internal scratch']
  %s0 = inlined_call_operand.hbm [shape: f32[128,128], index: 0, kind: input, shape index: {}]
  %s1 = inlined_call_operand.hbm [shape: f32[128,128], index: 1, kind: input, shape index: {}]
  %s2 = inlined_call_operand.hbm [shape: f32[128,128], index: 2, kind: input, shape index: {}]
  %s3 = inlined_call_operand.hbm [shape: f32[128,128], index: 3, kind: input, shape index: {}]
  %s4 = inlined_call_operand.hbm [shape: f32[1,1], index: 4, kind: output, shape index: {}]
  %s5 = sld [smem:[#allocation0]]
  $region42: #{tpu_custom_call.1} parent=0
    _
  %s7 = ssub.s32 1, %s5
  %s8 = scalar_select 0, %s7, %s5
  $region1: #{tpu_custom_call.1} parent=0
    #allocation2 [shape = 'u8[65536]{0}', space=vmem, size = 0x10000, scoped, tag = 'input window, operand 0, single buffered']
    #allocation3 [shape = 's32[1]{0}', space=sflag, size = 0x4, scoped, tag = 'scoped memory for tpu_custom_call.1']
    #allocation4 [shape = 's32[1]{0}', space=sflag, size = 0x4, scoped, tag = 'scoped memory for tpu_custom_call.1']
    #allocation5 [shape = 'u8[65536]{0}', space=vmem, size = 0x10000, scoped, tag = 'input window, operand 1, single buffered']
    #allocation6 [shape = 's32[1]{0}', space=sflag, size = 0x4, scoped, tag = 'scoped memory for tpu_custom_call.1']
    #allocation7 [shape = 'u8[65536]{0}', space=vmem, size = 0x10000, scoped, tag = 'input window, operand 2, single buffered']
    #allocation8 [shape = 'u8[65536]{0}', space=vmem, size = 0x10000, scoped, tag = 'input window, operand 3, single buffered']
    #allocation9 [shape = 's32[1]{0}', space=sflag, size = 0x4, scoped, tag = 'scoped memory for tpu_custom_call.1']
    #allocation10 [shape = 'u8[512]{0}', space=smem, size = 0x200, scoped, tag = 'output window, operand 0, single buffered']
    %9 = vsyncpa [#allocation3], 0
    %10 = vsyncpa [#allocation6], 0
    %11 = vsyncpa [#allocation9], 0
    %12 = vsyncpa [#allocation4], 0
    // Predicated region
    $region2: #{tpu_custom_call.1} parent=1 // pred_check
      _
    $region3: #{tpu_custom_call.1} parent=1 // pred_check_branch
      %14 = sbr.rel (0) target = $region5
    $region4: #{tpu_custom_call.1} parent=1 // pred_region
      %s16 = ssub.s32 2048, 2048
      %17 = vsyncadd [#allocation3], %s16
      %s18 = sshll.u32 [#allocation2], 4
      %s19 = int_to_ptr.vmem [resolvable:$true] %s18
      %24 = dma.hbm_to_vmem [thread:$0]  %s0, 2048, %s19, [#allocation3], 128, 128, 8
    $region5: #{tpu_custom_call.1} parent=1 // pred_fallthru
      _
    // Predicated region
    $region6: #{tpu_custom_call.1} parent=1 // pred_check
      _
    $region7: #{tpu_custom_call.1} parent=1 // pred_check_branch
      %26 = sbr.rel (0) target = $region9
    $region8: #{tpu_custom_call.1} parent=1 // pred_region
      %s28 = ssub.s32 2048, 2048
      %29 = vsyncadd [#allocation6], %s28
      %s30 = sshll.u32 [#allocation5], 4
      %s31 = int_to_ptr.vmem [resolvable:$true] %s30
      %36 = dma.hbm_to_vmem [thread:$0]  %s1, 2048, %s31, [#allocation6], 128, 128, 8
    $region9: #{tpu_custom_call.1} parent=1 // pred_fallthru
      _
    // Predicated region
    $region10: #{tpu_custom_call.1} parent=1 // pred_check
      _
    $region11: #{tpu_custom_call.1} parent=1 // pred_check_branch
      %38 = sbr.rel (0) target = $region13
    $region12: #{tpu_custom_call.1} parent=1 // pred_region
      %s40 = ssub.s32 2048, 2048
      %41 = vsyncadd [#allocation6], %s40
      %s42 = sshll.u32 [#allocation7], 4
      %s43 = int_to_ptr.vmem [resolvable:$true] %s42
      %48 = dma.hbm_to_vmem [thread:$0]  %s2, 2048, %s43, [#allocation6], 128, 128, 8
    $region13: #{tpu_custom_call.1} parent=1 // pred_fallthru
      _
    // Predicated region
    $region14: #{tpu_custom_call.1} parent=1 // pred_check
      _
    $region15: #{tpu_custom_call.1} parent=1 // pred_check_branch
      %50 = sbr.rel (0) target = $region17
    $region16: #{tpu_custom_call.1} parent=1 // pred_region
      %s52 = ssub.s32 2048, 2048
      %53 = vsyncadd [#allocation9], %s52
      %s54 = sshll.u32 [#allocation8], 4
      %s55 = int_to_ptr.vmem [resolvable:$true] %s54
      %60 = dma.hbm_to_vmem [thread:$0]  %s3, 2048, %s55, [#allocation9], 128, 128, 8
    $region17: #{tpu_custom_call.1} parent=1 // pred_fallthru
      _
    // Predicated region
    $region18: #{tpu_custom_call.1} parent=1 // pred_check
      _
    $region19: #{tpu_custom_call.1} parent=1 // pred_check_branch
      %62 = sbr.rel (0) target = $region21
    $region20: #{tpu_custom_call.1} parent=1 // pred_region
      %63 = dma.done [#allocation3], 2048
    $region21: #{tpu_custom_call.1} parent=1 // pred_fallthru
      _
    // Predicated region
    $region22: #{tpu_custom_call.1} parent=1 // pred_check
      _
    $region23: #{tpu_custom_call.1} parent=1 // pred_check_branch
      %65 = sbr.rel (0) target = $region25
    $region24: #{tpu_custom_call.1} parent=1 // pred_region
      %66 = dma.done [#allocation6], 2048
    $region25: #{tpu_custom_call.1} parent=1 // pred_fallthru
      _
    // Predicated region
    $region26: #{tpu_custom_call.1} parent=1 // pred_check
      _
    $region27: #{tpu_custom_call.1} parent=1 // pred_check_branch
      %68 = sbr.rel (0) target = $region29
    $region28: #{tpu_custom_call.1} parent=1 // pred_region
      %69 = dma.done [#allocation6], 2048
    $region29: #{tpu_custom_call.1} parent=1 // pred_fallthru
      _
    // Predicated region
    $region30: #{tpu_custom_call.1} parent=1 // pred_check
      _
    $region31: #{tpu_custom_call.1} parent=1 // pred_check_branch
      %71 = sbr.rel (0) target = $region33
    $region32: #{tpu_custom_call.1} parent=1 // pred_region
      %72 = dma.done [#allocation9], 2048
    $region33: #{tpu_custom_call.1} parent=1 // pred_fallthru
      _
    %v73 = vld [vmem:[#allocation8] sm:$0xff]
    %v74 = vld [vmem:[#allocation8 + $0x8] sm:$0xff]
    %v75 = vld [vmem:[#allocation8 + $0x10] sm:$0xff]
    %v76 = vld [vmem:[#allocation8 + $0x18] sm:$0xff]
    %v77 = vld [vmem:[#allocation8 + $0x20] sm:$0xff]
    %v78 = vld [vmem:[#allocation8 + $0x28] sm:$0xff]
    %v79 = vld [vmem:[#allocation8 + $0x30] sm:$0xff]
    %v80 = vld [vmem:[#allocation8 + $0x38] sm:$0xff]
    %v81 = vld [vmem:[#allocation8 + $0x40] sm:$0xff]
    %v82 = vld [vmem:[#allocation8 + $0x48] sm:$0xff]
    %v83 = vld [vmem:[#allocation8 + $0x50] sm:$0xff]
    %v84 = vld [vmem:[#allocation8 + $0x58] sm:$0xff]
    %v85 = vld [vmem:[#allocation8 + $0x60] sm:$0xff]
    %v86 = vld [vmem:[#allocation8 + $0x68] sm:$0xff]
    %v87 = vld [vmem:[#allocation8 + $0x70] sm:$0xff]
    %v88 = vld [vmem:[#allocation8 + $0x78] sm:$0xff]
    %v89 = vmul.f32 %v73, %v73
    %v90 = vmul.f32 %v74, %v74
    %v91 = vmul.f32 %v75, %v75
    %v92 = vmul.f32 %v76, %v76
    %v93 = vmul.f32 %v77, %v77
    %v94 = vmul.f32 %v78, %v78
    %v95 = vmul.f32 %v79, %v79
    %v96 = vmul.f32 %v80, %v80
    %v97 = vmul.f32 %v81, %v81
    %v98 = vmul.f32 %v82, %v82
    %v99 = vmul.f32 %v83, %v83
    %v100 = vmul.f32 %v84, %v84
    %v101 = vmul.f32 %v85, %v85
    %v102 = vmul.f32 %v86, %v86
    %v103 = vmul.f32 %v87, %v87
    %v104 = vmul.f32 %v88, %v88
    %105 = vadd.xlane.f32.xlu0 %v89
    %v106 = vpop.xlane.xlu0 %105
    %107 = vadd.xlane.f32.xlu0 %v90
    %v108 = vpop.xlane.xlu0 %107
    %109 = vadd.xlane.f32.xlu0 %v91
    %v110 = vpop.xlane.xlu0 %109
    %111 = vadd.xlane.f32.xlu0 %v92
    %v112 = vpop.xlane.xlu0 %111
    %113 = vadd.xlane.f32.xlu0 %v93
    %v114 = vpop.xlane.xlu0 %113
    %115 = vadd.xlane.f32.xlu0 %v94
    %v116 = vpop.xlane.xlu0 %115
    %117 = vadd.xlane.f32.xlu0 %v95
    %v118 = vpop.xlane.xlu0 %117
    %119 = vadd.xlane.f32.xlu0 %v96
    %v120 = vpop.xlane.xlu0 %119
    %121 = vadd.xlane.f32.xlu0 %v97
    %v122 = vpop.xlane.xlu0 %121
    %123 = vadd.xlane.f32.xlu0 %v98
    %v124 = vpop.xlane.xlu0 %123
    %125 = vadd.xlane.f32.xlu0 %v99
    %v126 = vpop.xlane.xlu0 %125
    %127 = vadd.xlane.f32.xlu0 %v100
    %v128 = vpop.xlane.xlu0 %127
    %129 = vadd.xlane.f32.xlu0 %v101
    %v130 = vpop.xlane.xlu0 %129
    %131 = vadd.xlane.f32.xlu0 %v102
    %v132 = vpop.xlane.xlu0 %131
    %133 = vadd.xlane.f32.xlu0 %v103
    %v134 = vpop.xlane.xlu0 %133
    %135 = vadd.xlane.f32.xlu0 %v104
    %v136 = vpop.xlane.xlu0 %135
    %v137 = vmax.f32 %v106, 1e-24
    %v138 = vmax.f32 %v108, 1e-24
    %v139 = vmax.f32 %v110, 1e-24
    %v140 = vmax.f32 %v112, 1e-24
    %v141 = vmax.f32 %v114, 1e-24
    %v142 = vmax.f32 %v116, 1e-24
    %v143 = vmax.f32 %v118, 1e-24
    %v144 = vmax.f32 %v120, 1e-24
    %v145 = vmax.f32 %v122, 1e-24
    %v146 = vmax.f32 %v124, 1e-24
    %v147 = vmax.f32 %v126, 1e-24
    %v148 = vmax.f32 %v128, 1e-24
    %v149 = vmax.f32 %v130, 1e-24
    %v150 = vmax.f32 %v132, 1e-24
    %v151 = vmax.f32 %v134, 1e-24
    %v152 = vmax.f32 %v136, 1e-24
    %v153 = vrsqrt.pop %v137
    %v154 = vrsqrt.pop %v138
    %v155 = vrsqrt.pop %v139
    %v156 = vrsqrt.pop %v140
    %v157 = vrsqrt.pop %v141
    %v158 = vrsqrt.pop %v142
    %v159 = vrsqrt.pop %v143
    %v160 = vrsqrt.pop %v144
    %v161 = vrsqrt.pop %v145
    %v162 = vrsqrt.pop %v146
    %v163 = vrsqrt.pop %v147
    %v164 = vrsqrt.pop %v148
    %v165 = vrsqrt.pop %v149
    %v166 = vrsqrt.pop %v150
    %v167 = vrsqrt.pop %v151
    %v168 = vrsqrt.pop %v152
    %v169 = vmul.f32 %v73, %v153
    %v170 = vmul.f32 %v74, %v154
    %v171 = vmul.f32 %v75, %v155
    %v172 = vmul.f32 %v76, %v156
    %v173 = vmul.f32 %v77, %v157
    %v174 = vmul.f32 %v78, %v158
    %v175 = vmul.f32 %v79, %v159
    %v176 = vmul.f32 %v80, %v160
    %v177 = vmul.f32 %v81, %v161
    %v178 = vmul.f32 %v82, %v162
    %v179 = vmul.f32 %v83, %v163
    %v180 = vmul.f32 %v84, %v164
    %v181 = vmul.f32 %v85, %v165
    %v182 = vmul.f32 %v86, %v166
    %v183 = vmul.f32 %v87, %v167
    %v184 = vmul.f32 %v88, %v168
    %v185 = vlaneseq
    %v186 = vshrl.u32 %v185, 7
    %v187 = vadd.s32 %v186, 8
    %v188 = vadd.s32 %v186, 16
    %v189 = vadd.s32 %v186, 24
    %v190 = vadd.s32 %v186, 32
    %v191 = vadd.s32 %v186, 40
    %v192 = vadd.s32 %v186, 48
    %v193 = vadd.s32 %v186, 56
    %v194 = vadd.s32 %v186, 64
    %v195 = vadd.s32 %v186, 72
    %v196 = vadd.s32 %v186, 80
    %v197 = vadd.s32 %v186, 88
    %v198 = vadd.s32 %v186, 96
    %v199 = vadd.s32 %v186, 104
    %v200 = vadd.s32 %v186, 112
    %v201 = vadd.s32 %v186, 120
    %v202 = vlaneseq
    %v203 = vand.u32 %v202, 127
    %vm204 = vcmp.ge.s32.totalorder %v186, 8
    %vm205 = vcmp.ge.s32.totalorder %v187, 8
    %vm206 = vcmp.ge.s32.totalorder %v188, 8
    %vm207 = vcmp.ge.s32.totalorder %v189, 8
    %vm208 = vcmp.ge.s32.totalorder %v190, 8
    %vm209 = vcmp.ge.s32.totalorder %v191, 8
    %vm210 = vcmp.ge.s32.totalorder %v192, 8
    %vm211 = vcmp.ge.s32.totalorder %v193, 8
    %vm212 = vcmp.ge.s32.totalorder %v194, 8
    %vm213 = vcmp.ge.s32.totalorder %v195, 8
    %vm214 = vcmp.ge.s32.totalorder %v196, 8
    %vm215 = vcmp.ge.s32.totalorder %v197, 8
    %vm216 = vcmp.ge.s32.totalorder %v198, 8
    %vm217 = vcmp.ge.s32.totalorder %v199, 8
    %vm218 = vcmp.ge.s32.totalorder %v200, 8
    %vm219 = vcmp.ge.s32.totalorder %v201, 8
    %vm220 = vcmp.ge.s32.totalorder %v203, 8
    %vm221 = vmor %vm204, %vm220
    %vm222 = vmor %vm205, %vm220
    %vm223 = vmor %vm206, %vm220
    %vm224 = vmor %vm207, %vm220
    %vm225 = vmor %vm208, %vm220
    %vm226 = vmor %vm209, %vm220
    %vm227 = vmor %vm210, %vm220
    %vm228 = vmor %vm211, %vm220
    %vm229 = vmor %vm212, %vm220
    %vm230 = vmor %vm213, %vm220
    %vm231 = vmor %vm214, %vm220
    %vm232 = vmor %vm215, %vm220
    %vm233 = vmor %vm216, %vm220
    %vm234 = vmor %vm217, %vm220
    %vm235 = vmor %vm218, %vm220
    %vm236 = vmor %vm219, %vm220
    %v237 = vld [vmem:[#allocation2] sm:$0xff]
    %v238 = vld [vmem:[#allocation2 + $0x8] sm:$0xff]
    %v239 = vld [vmem:[#allocation2 + $0x10] sm:$0xff]
    %v240 = vld [vmem:[#allocation2 + $0x18] sm:$0xff]
    %v241 = vld [vmem:[#allocation2 + $0x20] sm:$0xff]
    %v242 = vld [vmem:[#allocation2 + $0x28] sm:$0xff]
    %v243 = vld [vmem:[#allocation2 + $0x30] sm:$0xff]
    %v244 = vld [vmem:[#allocation2 + $0x38] sm:$0xff]
    %v245 = vld [vmem:[#allocation2 + $0x40] sm:$0xff]
    %v246 = vld [vmem:[#allocation2 + $0x48] sm:$0xff]
    %v247 = vld [vmem:[#allocation2 + $0x50] sm:$0xff]
    %v248 = vld [vmem:[#allocation2 + $0x58] sm:$0xff]
    %v249 = vld [vmem:[#allocation2 + $0x60] sm:$0xff]
    %v250 = vld [vmem:[#allocation2 + $0x68] sm:$0xff]
    %v251 = vld [vmem:[#allocation2 + $0x70] sm:$0xff]
    %v252 = vld [vmem:[#allocation2 + $0x78] sm:$0xff]
    %v253 = vmul.f32 %v237, %v237
    %v254 = vmul.f32 %v238, %v238
    %v255 = vmul.f32 %v239, %v239
    %v256 = vmul.f32 %v240, %v240
    %v257 = vmul.f32 %v241, %v241
    %v258 = vmul.f32 %v242, %v242
    %v259 = vmul.f32 %v243, %v243
    %v260 = vmul.f32 %v244, %v244
    %v261 = vmul.f32 %v245, %v245
    %v262 = vmul.f32 %v246, %v246
    %v263 = vmul.f32 %v247, %v247
    %v264 = vmul.f32 %v248, %v248
    %v265 = vmul.f32 %v249, %v249
    %v266 = vmul.f32 %v250, %v250
    %v267 = vmul.f32 %v251, %v251
    %v268 = vmul.f32 %v252, %v252
    %269 = vadd.xlane.f32.xlu0 %v253
    %v270 = vpop.xlane.xlu0 %269
    %271 = vadd.xlane.f32.xlu0 %v254
    %v272 = vpop.xlane.xlu0 %271
    %273 = vadd.xlane.f32.xlu0 %v255
    %v274 = vpop.xlane.xlu0 %273
    %275 = vadd.xlane.f32.xlu0 %v256
    %v276 = vpop.xlane.xlu0 %275
    %277 = vadd.xlane.f32.xlu0 %v257
    %v278 = vpop.xlane.xlu0 %277
    %279 = vadd.xlane.f32.xlu0 %v258
    %v280 = vpop.xlane.xlu0 %279
    %281 = vadd.xlane.f32.xlu0 %v259
    %v282 = vpop.xlane.xlu0 %281
    %283 = vadd.xlane.f32.xlu0 %v260
    %v284 = vpop.xlane.xlu0 %283
    %285 = vadd.xlane.f32.xlu0 %v261
    %v286 = vpop.xlane.xlu0 %285
    %287 = vadd.xlane.f32.xlu0 %v262
    %v288 = vpop.xlane.xlu0 %287
    %289 = vadd.xlane.f32.xlu0 %v263
    %v290 = vpop.xlane.xlu0 %289
    %291 = vadd.xlane.f32.xlu0 %v264
    %v292 = vpop.xlane.xlu0 %291
    %293 = vadd.xlane.f32.xlu0 %v265
    %v294 = vpop.xlane.xlu0 %293
    %295 = vadd.xlane.f32.xlu0 %v266
    %v296 = vpop.xlane.xlu0 %295
    %297 = vadd.xlane.f32.xlu0 %v267
    %v298 = vpop.xlane.xlu0 %297
    %299 = vadd.xlane.f32.xlu0 %v268
    %v300 = vpop.xlane.xlu0 %299
    %v301 = vmax.f32 %v270, 1e-24
    %v302 = vmax.f32 %v272, 1e-24
    %v303 = vmax.f32 %v274, 1e-24
    %v304 = vmax.f32 %v276, 1e-24
    %v305 = vmax.f32 %v278, 1e-24
    %v306 = vmax.f32 %v280, 1e-24
    %v307 = vmax.f32 %v282, 1e-24
    %v308 = vmax.f32 %v284, 1e-24
    %v309 = vmax.f32 %v286, 1e-24
    %v310 = vmax.f32 %v288, 1e-24
    %v311 = vmax.f32 %v290, 1e-24
    %v312 = vmax.f32 %v292, 1e-24
    %v313 = vmax.f32 %v294, 1e-24
    %v314 = vmax.f32 %v296, 1e-24
    %v315 = vmax.f32 %v298, 1e-24
    %v316 = vmax.f32 %v300, 1e-24
    %v317 = vrsqrt.pop %v301
    %v318 = vrsqrt.pop %v302
    %v319 = vrsqrt.pop %v303
    %v320 = vrsqrt.pop %v304
    %v321 = vrsqrt.pop %v305
    %v322 = vrsqrt.pop %v306
    %v323 = vrsqrt.pop %v307
    %v324 = vrsqrt.pop %v308
    %v325 = vrsqrt.pop %v309
    %v326 = vrsqrt.pop %v310
    %v327 = vrsqrt.pop %v311
    %v328 = vrsqrt.pop %v312
    %v329 = vrsqrt.pop %v313
    %v330 = vrsqrt.pop %v314
    %v331 = vrsqrt.pop %v315
    %v332 = vrsqrt.pop %v316
    %v333 = vmul.f32 %v237, %v317
    %v334 = vmul.f32 %v238, %v318
    %v335 = vmul.f32 %v239, %v319
    %v336 = vmul.f32 %v240, %v320
    %v337 = vmul.f32 %v241, %v321
    %v338 = vmul.f32 %v242, %v322
    %v339 = vmul.f32 %v243, %v323
    %v340 = vmul.f32 %v244, %v324
    %v341 = vmul.f32 %v245, %v325
    %v342 = vmul.f32 %v246, %v326
    %v343 = vmul.f32 %v247, %v327
    %v344 = vmul.f32 %v248, %v328
    %v345 = vmul.f32 %v249, %v329
    %v346 = vmul.f32 %v250, %v330
    %v347 = vmul.f32 %v251, %v331
    %v348 = vmul.f32 %v252, %v332
    %349 = vmatprep.subr.mxu0 0.0
    %350 = vmatpush1.xpose.msra.mxu0 %v169
    %351 = vmatprep.subr.mxu0 0.0
    %352 = vmatpush1.xpose.msra.mxu0 %v170
    %353 = vmatprep.subr.mxu0 0.0
    %354 = vmatpush1.xpose.msra.mxu0 %v171
    %355 = vmatprep.subr.mxu0 0.0
    %356 = vmatpush1.xpose.msra.mxu0 %v172
    %357 = vmatprep.subr.mxu0 0.0
    %358 = vmatpush1.xpose.msra.mxu0 %v173
    %359 = vmatprep.subr.mxu0 0.0
    %360 = vmatpush1.xpose.msra.mxu0 %v174
    %361 = vmatprep.subr.mxu0 0.0
    %362 = vmatpush1.xpose.msra.mxu0 %v175
    %363 = vmatprep.subr.mxu0 0.0
    %364 = vmatpush1.xpose.msra.mxu0 %v176
    %365 = vmatprep.subr.mxu0 0.0
    %366 = vmatpush1.xpose.msra.mxu0 %v177
    %367 = vmatprep.subr.mxu0 0.0
    %368 = vmatpush1.xpose.msra.mxu0 %v178
    %369 = vmatprep.subr.mxu0 0.0
    %370 = vmatpush1.xpose.msra.mxu0 %v179
    %371 = vmatprep.subr.mxu0 0.0
    %372 = vmatpush1.xpose.msra.mxu0 %v180
    %373 = vmatprep.subr.mxu0 0.0
    %374 = vmatpush1.xpose.msra.mxu0 %v181
    %375 = vmatprep.subr.mxu0 0.0
    %376 = vmatpush1.xpose.msra.mxu0 %v182
    %377 = vmatprep.subr.mxu0 0.0
    %378 = vmatpush1.xpose.msra.mxu0 %v183
    %379 = vmatprep.subr.mxu0 0.0
    %380 = vmatpush1.xpose.msra.mxu0 %v184
    %381 = vmatprep.subr.mxu0 0.0
    %382 = vmatpush1.xpose.msra.mxu0 0.0
    %383 = vmatprep.subr.mxu0 0.0
    %384 = vmatpush1.xpose.msra.mxu0 0.0
    %385 = vmatprep.subr.mxu0 0.0
    %386 = vmatpush1.xpose.msra.mxu0 0.0
    %387 = vmatprep.subr.mxu0 0.0
    %388 = vmatpush1.xpose.msra.mxu0 0.0
    %389 = vmatprep.subr.mxu0 0.0
    %390 = vmatpush1.xpose.msra.mxu0 0.0
    %391 = vmatprep.subr.mxu0 0.0
    %392 = vmatpush1.xpose.msra.mxu0 0.0
    %393 = vmatprep.subr.mxu0 0.0
    %394 = vmatpush1.xpose.msra.mxu0 0.0
    %395 = vmatprep.subr.mxu0 0.0
    %396 = vmatpush1.xpose.msra.mxu0 0.0
    %397 = vmatprep.subr.mxu0 0.0
    %398 = vmatpush1.xpose.msra.mxu0 0.0
    %399 = vmatprep.subr.mxu0 0.0
    %400 = vmatpush1.xpose.msra.mxu0 0.0
    %401 = vmatprep.subr.mxu0 0.0
    %402 = vmatpush1.xpose.msra.mxu0 0.0
    %403 = vmatprep.subr.mxu0 0.0
    %404 = vmatpush1.xpose.msra.mxu0 0.0
    %405 = vmatprep.subr.mxu0 0.0
    %406 = vmatpush1.xpose.msra.mxu0 0.0
    %407 = vmatprep.subr.mxu0 0.0
    %408 = vmatpush1.xpose.msra.mxu0 0.0
    %409 = vmatprep.subr.mxu0 0.0
    %410 = vmatpush1.xpose.msra.mxu0 0.0
    %411 = vmatprep.subr.mxu0 0.0
    %412 = vmatpush1.xpose.msra.mxu0 0.0
    %413 = vmatprep.mubr.f32.mxu0 0.0
    %414 = vmatmul.mubr.f32.gmra.mrb[0].mxu0 %v333
    %v415 = vpop.f32.mrb[0].mxu0
    %v416 = vadd.f32 0.0, %v415
    %v417 = vpop.f32.mrb[0].mxu0
    %418 = vmatprep.mubr.f32.mxu0 0.0
    %419 = vmatmul.mubr.f32.gmra.mrb[0].mxu0 %v334
    %v420 = vpop.f32.mrb[0].mxu0
    %v421 = vadd.f32 0.0, %v420
    %v422 = vpop.f32.mrb[0].mxu0
    %423 = vmatprep.mubr.f32.mxu0 0.0
    %424 = vmatmul.mubr.f32.gmra.mrb[0].mxu0 %v335
    %v425 = vpop.f32.mrb[0].mxu0
    %v426 = vadd.f32 0.0, %v425
    %v427 = vpop.f32.mrb[0].mxu0
    %428 = vmatprep.mubr.f32.mxu0 0.0
    %429 = vmatmul.mubr.f32.gmra.mrb[0].mxu0 %v336
    %v430 = vpop.f32.mrb[0].mxu0
    %v431 = vadd.f32 0.0, %v430
    %v432 = vpop.f32.mrb[0].mxu0
    %433 = vmatprep.mubr.f32.mxu0 0.0
    %434 = vmatmul.mubr.f32.gmra.mrb[0].mxu0 %v337
    %v435 = vpop.f32.mrb[0].mxu0
    %v436 = vadd.f32 0.0, %v435
    %v437 = vpop.f32.mrb[0].mxu0
    %438 = vmatprep.mubr.f32.mxu0 0.0
    %439 = vmatmul.mubr.f32.gmra.mrb[0].mxu0 %v338
    %v440 = vpop.f32.mrb[0].mxu0
    %v441 = vadd.f32 0.0, %v440
    %v442 = vpop.f32.mrb[0].mxu0
    %443 = vmatprep.mubr.f32.mxu0 0.0
    %444 = vmatmul.mubr.f32.gmra.mrb[0].mxu0 %v339
    %v445 = vpop.f32.mrb[0].mxu0
    %v446 = vadd.f32 0.0, %v445
    %v447 = vpop.f32.mrb[0].mxu0
    %448 = vmatprep.mubr.f32.mxu0 0.0
    %449 = vmatmul.mubr.f32.gmra.mrb[0].mxu0 %v340
    %v450 = vpop.f32.mrb[0].mxu0
    %v451 = vadd.f32 0.0, %v450
    %v452 = vpop.f32.mrb[0].mxu0
    %453 = vmatprep.mubr.f32.mxu0 0.0
    %454 = vmatmul.mubr.f32.gmra.mrb[0].mxu0 %v341
    %v455 = vpop.f32.mrb[0].mxu0
    %v456 = vadd.f32 0.0, %v455
    %v457 = vpop.f32.mrb[0].mxu0
    %458 = vmatprep.mubr.f32.mxu0 0.0
    %459 = vmatmul.mubr.f32.gmra.mrb[0].mxu0 %v342
    %v460 = vpop.f32.mrb[0].mxu0
    %v461 = vadd.f32 0.0, %v460
    %v462 = vpop.f32.mrb[0].mxu0
    %463 = vmatprep.mubr.f32.mxu0 0.0
    %464 = vmatmul.mubr.f32.gmra.mrb[0].mxu0 %v343
    %v465 = vpop.f32.mrb[0].mxu0
    %v466 = vadd.f32 0.0, %v465
    %v467 = vpop.f32.mrb[0].mxu0
    %468 = vmatprep.mubr.f32.mxu0 0.0
    %469 = vmatmul.mubr.f32.gmra.mrb[0].mxu0 %v344
    %v470 = vpop.f32.mrb[0].mxu0
    %v471 = vadd.f32 0.0, %v470
    %v472 = vpop.f32.mrb[0].mxu0
    %473 = vmatprep.mubr.f32.mxu0 0.0
    %474 = vmatmul.mubr.f32.gmra.mrb[0].mxu0 %v345
    %v475 = vpop.f32.mrb[0].mxu0
    %v476 = vadd.f32 0.0, %v475
    %v477 = vpop.f32.mrb[0].mxu0
    %478 = vmatprep.mubr.f32.mxu0 0.0
    %479 = vmatmul.mubr.f32.gmra.mrb[0].mxu0 %v346
    %v480 = vpop.f32.mrb[0].mxu0
    %v481 = vadd.f32 0.0, %v480
    %v482 = vpop.f32.mrb[0].mxu0
    %483 = vmatprep.mubr.f32.mxu0 0.0
    %484 = vmatmul.mubr.f32.gmra.mrb[0].mxu0 %v347
    %v485 = vpop.f32.mrb[0].mxu0
    %v486 = vadd.f32 0.0, %v485
    %v487 = vpop.f32.mrb[0].mxu0
    %488 = vmatprep.mubr.f32.mxu0 0.0
    %489 = vmatmul.mubr.f32.gmra.mrb[0].mxu0 %v348
    %v490 = vpop.f32.mrb[0].mxu0
    %v491 = vadd.f32 0.0, %v490
    %v492 = vpop.f32.mrb[0].mxu0
    %493 = vdwg.mxu0
    %v494 = vmul.f32 %v416, 10.0
    %v495 = vmul.f32 %v421, 10.0
    %v496 = vmul.f32 %v426, 10.0
    %v497 = vmul.f32 %v431, 10.0
    %v498 = vmul.f32 %v436, 10.0
    %v499 = vmul.f32 %v441, 10.0
    %v500 = vmul.f32 %v446, 10.0
    %v501 = vmul.f32 %v451, 10.0
    %v502 = vmul.f32 %v456, 10.0
    %v503 = vmul.f32 %v461, 10.0
    %v504 = vmul.f32 %v466, 10.0
    %v505 = vmul.f32 %v471, 10.0
    %v506 = vmul.f32 %v476, 10.0
    %v507 = vmul.f32 %v481, 10.0
    %v508 = vmul.f32 %v486, 10.0
    %v509 = vmul.f32 %v491, 10.0
    %v510 = vsel %vm221, -1e+30, %v494
    %v511 = vsel %vm222, -1e+30, %v495
    %v512 = vsel %vm223, -1e+30, %v496
    %v513 = vsel %vm224, -1e+30, %v497
    %v514 = vsel %vm225, -1e+30, %v498
    %v515 = vsel %vm226, -1e+30, %v499
    %v516 = vsel %vm227, -1e+30, %v500
    %v517 = vsel %vm228, -1e+30, %v501
    %v518 = vsel %vm229, -1e+30, %v502
    %v519 = vsel %vm230, -1e+30, %v503
    %v520 = vsel %vm231, -1e+30, %v504
    %v521 = vsel %vm232, -1e+30, %v505
    %v522 = vsel %vm233, -1e+30, %v506
    %v523 = vsel %vm234, -1e+30, %v507
    %v524 = vsel %vm235, -1e+30, %v508
    %v525 = vsel %vm236, -1e+30, %v509
    %v526 = vmax.f32 %v510, %v514
    %v527 = vmax.f32 %v511, %v515
    %v528 = vmax.f32 %v512, %v516
    %v529 = vmax.f32 %v513, %v517
    %v530 = vmax.f32 %v526, %v518
    %v531 = vmax.f32 %v527, %v519
    %v532 = vmax.f32 %v528, %v520
    %v533 = vmax.f32 %v529, %v521
    %v534 = vmax.f32 %v530, %v522
    %v535 = vmax.f32 %v531, %v523
    %v536 = vmax.f32 %v532, %v524
    %v537 = vmax.f32 %v533, %v525
    %v538 = vmax.f32 %v534, %v535
    %v539 = vmax.f32 %v536, %v537
    %v540 = vmax.f32 %v538, %v539
    %541 = vmax.xlane.f32.xlu0 %v540
    %v542 = vpop.xlane.xlu0 %541
    %v543 = vrot.slane %v542, 4
    %v544 = vmax.f32 %v542, %v543
    %v545 = vrot.slane %v544, 2
    %v546 = vmax.f32 %v544, %v545
    %v547 = vrot.slane %v546, 1
    %v548 = vmax.f32 %v546, %v547
    %s549 = vtos %v548
    %v550 = vstv %s549
    %v551 = vsub.f32 %v510, %v550
    %v552 = vsub.f32 %v511, %v550
    %v553 = vsub.f32 %v512, %v550
    %v554 = vsub.f32 %v513, %v550
    %v555 = vsub.f32 %v514, %v550
    %v556 = vsub.f32 %v515, %v550
    %v557 = vsub.f32 %v516, %v550
    %v558 = vsub.f32 %v517, %v550
    %v559 = vsub.f32 %v518, %v550
    %v560 = vsub.f32 %v519, %v550
    %v561 = vsub.f32 %v520, %v550
    %v562 = vsub.f32 %v521, %v550
    %v563 = vsub.f32 %v522, %v550
    %v564 = vsub.f32 %v523, %v550
    %v565 = vsub.f32 %v524, %v550
    %v566 = vsub.f32 %v525, %v550
    %v567 = vmul.f32 %v551, 1.442695
    %v568 = vpow.pop %v567
    %v569 = vmul.f32 %v552, 1.442695
    %v570 = vpow.pop %v569
    %v571 = vmul.f32 %v553, 1.442695
    %v572 = vpow.pop %v571
    %v573 = vmul.f32 %v554, 1.442695
    %v574 = vpow.pop %v573
    %v575 = vmul.f32 %v555, 1.442695
    %v576 = vpow.pop %v575
    %v577 = vmul.f32 %v556, 1.442695
    %v578 = vpow.pop %v577
    %v579 = vmul.f32 %v557, 1.442695
    %v580 = vpow.pop %v579
    %v581 = vmul.f32 %v558, 1.442695
    %v582 = vpow.pop %v581
    %v583 = vmul.f32 %v559, 1.442695
    %v584 = vpow.pop %v583
    %v585 = vmul.f32 %v560, 1.442695
    %v586 = vpow.pop %v585
    %v587 = vmul.f32 %v561, 1.442695
    %v588 = vpow.pop %v587
    %v589 = vmul.f32 %v562, 1.442695
    %v590 = vpow.pop %v589
    %v591 = vmul.f32 %v563, 1.442695
    %v592 = vpow.pop %v591
    %v593 = vmul.f32 %v564, 1.442695
    %v594 = vpow.pop %v593
    %v595 = vmul.f32 %v565, 1.442695
    %v596 = vpow.pop %v595
    %v597 = vmul.f32 %v566, 1.442695
    %v598 = vpow.pop %v597
    %599 = vadd.xlane.f32.xlu0 %v568
    %v600 = vpop.xlane.xlu0 %599
    %601 = vadd.xlane.f32.xlu0 %v570
    %v602 = vpop.xlane.xlu0 %601
    %603 = vadd.xlane.f32.xlu0 %v572
    %v604 = vpop.xlane.xlu0 %603
    %605 = vadd.xlane.f32.xlu0 %v574
    %v606 = vpop.xlane.xlu0 %605
    %607 = vadd.xlane.f32.xlu0 %v576
    %v608 = vpop.xlane.xlu0 %607
    %609 = vadd.xlane.f32.xlu0 %v578
    %v610 = vpop.xlane.xlu0 %609
    %611 = vadd.xlane.f32.xlu0 %v580
    %v612 = vpop.xlane.xlu0 %611
    %613 = vadd.xlane.f32.xlu0 %v582
    %v614 = vpop.xlane.xlu0 %613
    %615 = vadd.xlane.f32.xlu0 %v584
    %v616 = vpop.xlane.xlu0 %615
    %617 = vadd.xlane.f32.xlu0 %v586
    %v618 = vpop.xlane.xlu0 %617
    %619 = vadd.xlane.f32.xlu0 %v588
    %v620 = vpop.xlane.xlu0 %619
    %621 = vadd.xlane.f32.xlu0 %v590
    %v622 = vpop.xlane.xlu0 %621
    %623 = vadd.xlane.f32.xlu0 %v592
    %v624 = vpop.xlane.xlu0 %623
    %625 = vadd.xlane.f32.xlu0 %v594
    %v626 = vpop.xlane.xlu0 %625
    %627 = vadd.xlane.f32.xlu0 %v596
    %v628 = vpop.xlane.xlu0 %627
    %629 = vadd.xlane.f32.xlu0 %v598
    %v630 = vpop.xlane.xlu0 %629
    %v631 = vadd.f32 %v568, %v570
    %v632 = vadd.f32 %v631, %v572
    %v633 = vadd.f32 %v632, %v574
    %v634 = vadd.f32 %v633, %v576
    %v635 = vadd.f32 %v634, %v578
    %v636 = vadd.f32 %v635, %v580
    %v637 = vadd.f32 %v636, %v582
    %v638 = vadd.f32 %v637, %v584
    %v639 = vadd.f32 %v638, %v586
    %v640 = vadd.f32 %v639, %v588
    %v641 = vadd.f32 %v640, %v590
    %v642 = vadd.f32 %v641, %v592
    %v643 = vadd.f32 %v642, %v594
    %v644 = vadd.f32 %v643, %v596
    %v645 = vadd.f32 %v644, %v598
    %v646 = vrot.slane %v645, 4
    %v647 = vadd.f32 %v645, %v646
    %v648 = vrot.slane %v647, 2
    %v649 = vadd.f32 %v647, %v648
    %v650 = vrot.slane %v649, 1
    %v651 = vadd.f32 %v649, %v650
    %vm652 = vcmp.gt.f32.partialorder %v600, 0.0
    %vm653 = vcmp.gt.f32.partialorder %v602, 0.0
    %vm654 = vcmp.gt.f32.partialorder %v604, 0.0
    %vm655 = vcmp.gt.f32.partialorder %v606, 0.0
    %vm656 = vcmp.gt.f32.partialorder %v608, 0.0
    %vm657 = vcmp.gt.f32.partialorder %v610, 0.0
    %vm658 = vcmp.gt.f32.partialorder %v612, 0.0
    %vm659 = vcmp.gt.f32.partialorder %v614, 0.0
    %vm660 = vcmp.gt.f32.partialorder %v616, 0.0
    %vm661 = vcmp.gt.f32.partialorder %v618, 0.0
    %vm662 = vcmp.gt.f32.partialorder %v620, 0.0
    %vm663 = vcmp.gt.f32.partialorder %v622, 0.0
    %vm664 = vcmp.gt.f32.partialorder %v624, 0.0
    %vm665 = vcmp.gt.f32.partialorder %v626, 0.0
    %vm666 = vcmp.gt.f32.partialorder %v628, 0.0
    %vm667 = vcmp.gt.f32.partialorder %v630, 0.0
    %v668 = vmax.f32 %v600, 1e-37
    %v669 = vmax.f32 %v602, 1e-37
    %v670 = vmax.f32 %v604, 1e-37
    %v671 = vmax.f32 %v606, 1e-37
    %v672 = vmax.f32 %v608, 1e-37
    %v673 = vmax.f32 %v610, 1e-37
    %v674 = vmax.f32 %v612, 1e-37
    %v675 = vmax.f32 %v614, 1e-37
    %v676 = vmax.f32 %v616, 1e-37
    %v677 = vmax.f32 %v618, 1e-37
    %v678 = vmax.f32 %v620, 1e-37
    %v679 = vmax.f32 %v622, 1e-37
    %v680 = vmax.f32 %v624, 1e-37
    %v681 = vmax.f32 %v626, 1e-37
    %v682 = vmax.f32 %v628, 1e-37
    %v683 = vmax.f32 %v630, 1e-37
    %v684 = vlog2.pop %v668
    %v685 = vmul.f32 %v684, 0.6931472
    %v686 = vlog2.pop %v669
    %v687 = vmul.f32 %v686, 0.6931472
    %v688 = vlog2.pop %v670
    %v689 = vmul.f32 %v688, 0.6931472
    %v690 = vlog2.pop %v671
    %v691 = vmul.f32 %v690, 0.6931472
    %v692 = vlog2.pop %v672
    %v693 = vmul.f32 %v692, 0.6931472
    %v694 = vlog2.pop %v673
    %v695 = vmul.f32 %v694, 0.6931472
    %v696 = vlog2.pop %v674
    %v697 = vmul.f32 %v696, 0.6931472
    %v698 = vlog2.pop %v675
    %v699 = vmul.f32 %v698, 0.6931472
    %v700 = vlog2.pop %v676
    %v701 = vmul.f32 %v700, 0.6931472
    %v702 = vlog2.pop %v677
    %v703 = vmul.f32 %v702, 0.6931472
    %v704 = vlog2.pop %v678
    %v705 = vmul.f32 %v704, 0.6931472
    %v706 = vlog2.pop %v679
    %v707 = vmul.f32 %v706, 0.6931472
    %v708 = vlog2.pop %v680
    %v709 = vmul.f32 %v708, 0.6931472
    %v710 = vlog2.pop %v681
    %v711 = vmul.f32 %v710, 0.6931472
    %v712 = vlog2.pop %v682
    %v713 = vmul.f32 %v712, 0.6931472
    %v714 = vlog2.pop %v683
    %v715 = vmul.f32 %v714, 0.6931472
    %v716 = vadd.f32 %v550, %v685
    %v717 = vadd.f32 %v550, %v687
    %v718 = vadd.f32 %v550, %v689
    %v719 = vadd.f32 %v550, %v691
    %v720 = vadd.f32 %v550, %v693
    %v721 = vadd.f32 %v550, %v695
    %v722 = vadd.f32 %v550, %v697
    %v723 = vadd.f32 %v550, %v699
    %v724 = vadd.f32 %v550, %v701
    %v725 = vadd.f32 %v550, %v703
    %v726 = vadd.f32 %v550, %v705
    %v727 = vadd.f32 %v550, %v707
    %v728 = vadd.f32 %v550, %v709
    %v729 = vadd.f32 %v550, %v711
    %v730 = vadd.f32 %v550, %v713
    %v731 = vadd.f32 %v550, %v715
    %v732 = vsel %vm652, %v716, 0.0
    %v733 = vsel %vm653, %v717, 0.0
    %v734 = vsel %vm654, %v718, 0.0
    %v735 = vsel %vm655, %v719, 0.0
    %v736 = vsel %vm656, %v720, 0.0
    %v737 = vsel %vm657, %v721, 0.0
    %v738 = vsel %vm658, %v722, 0.0
    %v739 = vsel %vm659, %v723, 0.0
    %v740 = vsel %vm660, %v724, 0.0
    %v741 = vsel %vm661, %v725, 0.0
    %v742 = vsel %vm662, %v726, 0.0
    %v743 = vsel %vm663, %v727, 0.0
    %v744 = vsel %vm664, %v728, 0.0
    %v745 = vsel %vm665, %v729, 0.0
    %v746 = vsel %vm666, %v730, 0.0
    %v747 = vsel %vm667, %v731, 0.0
    %vm748 = vcmask 7168
    %v749 = vsel %vm748, %v732, 0.0
    %v750 = vsel %vm748, %v733, 0.0
    %v751 = vadd.f32 %v749, %v750
    %v752 = vsel %vm748, %v734, 0.0
    %v753 = vadd.f32 %v751, %v752
    %v754 = vsel %vm748, %v735, 0.0
    %v755 = vadd.f32 %v753, %v754
    %v756 = vsel %vm748, %v736, 0.0
    %v757 = vadd.f32 %v755, %v756
    %v758 = vsel %vm748, %v737, 0.0
    %v759 = vadd.f32 %v757, %v758
    %v760 = vsel %vm748, %v738, 0.0
    %v761 = vadd.f32 %v759, %v760
    %v762 = vsel %vm748, %v739, 0.0
    %v763 = vadd.f32 %v761, %v762
    %v764 = vsel %vm748, %v740, 0.0
    %v765 = vadd.f32 %v763, %v764
    %v766 = vsel %vm748, %v741, 0.0
    %v767 = vadd.f32 %v765, %v766
    %v768 = vsel %vm748, %v742, 0.0
    %v769 = vadd.f32 %v767, %v768
    %v770 = vsel %vm748, %v743, 0.0
    %v771 = vadd.f32 %v769, %v770
    %v772 = vsel %vm748, %v744, 0.0
    %v773 = vadd.f32 %v771, %v772
    %v774 = vsel %vm748, %v745, 0.0
    %v775 = vadd.f32 %v773, %v774
    %v776 = vsel %vm748, %v746, 0.0
    %v777 = vadd.f32 %v775, %v776
    %v778 = vsel %vm748, %v747, 0.0
    %v779 = vadd.f32 %v777, %v778
    %780 = vadd.xlane.f32.xlu0 %v779
    %v781 = vpop.xlane.xlu0 %780
    %v782 = vrot.slane %v781, 4
    %v783 = vadd.f32 %v781, %v782
    %v784 = vrot.slane %v783, 2
    %v785 = vadd.f32 %v783, %v784
    %v786 = vrot.slane %v785, 1
    %v787 = vadd.f32 %v785, %v786
    %s788 = vtos %v787
    %vm789 = vcmp.gt.f32.partialorder %v651, 0.0
    %v790 = vmax.f32 %v651, 1e-37
    %v791 = vlog2.pop %v790
    %v792 = vmul.f32 %v791, 0.6931472
    %v793 = vadd.f32 %v550, %v792
    %v794 = vsel %vm789, %v793, 0.0
    %vm795 = vcmask 1040384
    %v796 = vsel %vm795, %v794, 0.0
    %797 = vadd.xlane.f32.xlu0 %v796
    %v798 = vpop.xlane.xlu0 %797
    %v799 = vrot.slane %v798, 4
    %v800 = vadd.f32 %v798, %v799
    %v801 = vrot.slane %v800, 2
    %v802 = vadd.f32 %v800, %v801
    %v803 = vrot.slane %v802, 1
    %v804 = vadd.f32 %v802, %v803
    %s805 = vtos %v804
    %v806 = vmul.f32 %v333, %v169
    %v807 = vmul.f32 %v334, %v170
    %v808 = vmul.f32 %v335, %v171
    %v809 = vmul.f32 %v336, %v172
    %v810 = vmul.f32 %v337, %v173
    %v811 = vmul.f32 %v338, %v174
    %v812 = vmul.f32 %v339, %v175
    %v813 = vmul.f32 %v340, %v176
    %v814 = vmul.f32 %v341, %v177
    %v815 = vmul.f32 %v342, %v178
    %v816 = vmul.f32 %v343, %v179
    %v817 = vmul.f32 %v344, %v180
    %v818 = vmul.f32 %v345, %v181
    %v819 = vmul.f32 %v346, %v182
    %v820 = vmul.f32 %v347, %v183
    %v821 = vmul.f32 %v348, %v184
    %v822 = vadd.f32 %v806, %v807
    %v823 = vadd.f32 %v822, %v808
    %v824 = vadd.f32 %v823, %v809
    %v825 = vadd.f32 %v824, %v810
    %v826 = vadd.f32 %v825, %v811
    %v827 = vadd.f32 %v826, %v812
    %v828 = vadd.f32 %v827, %v813
    %v829 = vadd.f32 %v828, %v814
    %v830 = vadd.f32 %v829, %v815
    %v831 = vadd.f32 %v830, %v816
    %v832 = vadd.f32 %v831, %v817
    %v833 = vadd.f32 %v832, %v818
    %v834 = vadd.f32 %v833, %v819
    %v835 = vadd.f32 %v834, %v820
    %v836 = vadd.f32 %v835, %v821
    %837 = vadd.xlane.f32.xlu0 %v836
    %v838 = vpop.xlane.xlu0 %837
    %v839 = vrot.slane %v838, 4
    %v840 = vadd.f32 %v838, %v839
    %v841 = vrot.slane %v840, 2
    %v842 = vadd.f32 %v840, %v841
    %v843 = vrot.slane %v842, 1
    %v844 = vadd.f32 %v842, %v843
    %s845 = vtos %v844
    %s846 = smul.f32 %s845, 10.0
    %s847 = sadd.f32 %s788, %s805
    %s848 = smul.f32 %s846, 2.0
    %s849 = ssub.f32 %s847, %s848
    %v850 = vrcp.pop 8.0
    %s851 = vtos %v850
    %s852 = smul.f32 %s849, %s851
    %s853 = sadd.f32 %s852, 0.0
    %v854 = vld [vmem:[#allocation5] sm:$0xff]
    %v855 = vld [vmem:[#allocation5 + $0x8] sm:$0xff]
    %v856 = vld [vmem:[#allocation5 + $0x10] sm:$0xff]
    %v857 = vld [vmem:[#allocation5 + $0x18] sm:$0xff]
    %v858 = vld [vmem:[#allocation5 + $0x20] sm:$0xff]
    %v859 = vld [vmem:[#allocation5 + $0x28] sm:$0xff]
    %v860 = vld [vmem:[#allocation5 + $0x30] sm:$0xff]
    %v861 = vld [vmem:[#allocation5 + $0x38] sm:$0xff]
    %v862 = vld [vmem:[#allocation5 + $0x40] sm:$0xff]
    %v863 = vld [vmem:[#allocation5 + $0x48] sm:$0xff]
    %v864 = vld [vmem:[#allocation5 + $0x50] sm:$0xff]
    %v865 = vld [vmem:[#allocation5 + $0x58] sm:$0xff]
    %v866 = vld [vmem:[#allocation5 + $0x60] sm:$0xff]
    %v867 = vld [vmem:[#allocation5 + $0x68] sm:$0xff]
    %v868 = vld [vmem:[#allocation5 + $0x70] sm:$0xff]
    %v869 = vld [vmem:[#allocation5 + $0x78] sm:$0xff]
    %v870 = vmul.f32 %v854, %v854
    %v871 = vmul.f32 %v855, %v855
    %v872 = vmul.f32 %v856, %v856
    %v873 = vmul.f32 %v857, %v857
    %v874 = vmul.f32 %v858, %v858
    %v875 = vmul.f32 %v859, %v859
    %v876 = vmul.f32 %v860, %v860
    %v877 = vmul.f32 %v861, %v861
    %v878 = vmul.f32 %v862, %v862
    %v879 = vmul.f32 %v863, %v863
    %v880 = vmul.f32 %v864, %v864
    %v881 = vmul.f32 %v865, %v865
    %v882 = vmul.f32 %v866, %v866
    %v883 = vmul.f32 %v867, %v867
    %v884 = vmul.f32 %v868, %v868
    %v885 = vmul.f32 %v869, %v869
    %886 = vadd.xlane.f32.xlu0 %v870
    %v887 = vpop.xlane.xlu0 %886
    %888 = vadd.xlane.f32.xlu0 %v871
    %v889 = vpop.xlane.xlu0 %888
    %890 = vadd.xlane.f32.xlu0 %v872
    %v891 = vpop.xlane.xlu0 %890
    %892 = vadd.xlane.f32.xlu0 %v873
    %v893 = vpop.xlane.xlu0 %892
    %894 = vadd.xlane.f32.xlu0 %v874
    %v895 = vpop.xlane.xlu0 %894
    %896 = vadd.xlane.f32.xlu0 %v875
    %v897 = vpop.xlane.xlu0 %896
    %898 = vadd.xlane.f32.xlu0 %v876
    %v899 = vpop.xlane.xlu0 %898
    %900 = vadd.xlane.f32.xlu0 %v877
    %v901 = vpop.xlane.xlu0 %900
    %902 = vadd.xlane.f32.xlu0 %v878
    %v903 = vpop.xlane.xlu0 %902
    %904 = vadd.xlane.f32.xlu0 %v879
    %v905 = vpop.xlane.xlu0 %904
    %906 = vadd.xlane.f32.xlu0 %v880
    %v907 = vpop.xlane.xlu0 %906
    %908 = vadd.xlane.f32.xlu0 %v881
    %v909 = vpop.xlane.xlu0 %908
    %910 = vadd.xlane.f32.xlu0 %v882
    %v911 = vpop.xlane.xlu0 %910
    %912 = vadd.xlane.f32.xlu0 %v883
    %v913 = vpop.xlane.xlu0 %912
    %914 = vadd.xlane.f32.xlu0 %v884
    %v915 = vpop.xlane.xlu0 %914
    %916 = vadd.xlane.f32.xlu0 %v885
    %v917 = vpop.xlane.xlu0 %916
    %v918 = vmax.f32 %v887, 1e-24
    %v919 = vmax.f32 %v889, 1e-24
    %v920 = vmax.f32 %v891, 1e-24
    %v921 = vmax.f32 %v893, 1e-24
    %v922 = vmax.f32 %v895, 1e-24
    %v923 = vmax.f32 %v897, 1e-24
    %v924 = vmax.f32 %v899, 1e-24
    %v925 = vmax.f32 %v901, 1e-24
    %v926 = vmax.f32 %v903, 1e-24
    %v927 = vmax.f32 %v905, 1e-24
    %v928 = vmax.f32 %v907, 1e-24
    %v929 = vmax.f32 %v909, 1e-24
    %v930 = vmax.f32 %v911, 1e-24
    %v931 = vmax.f32 %v913, 1e-24
    %v932 = vmax.f32 %v915, 1e-24
    %v933 = vmax.f32 %v917, 1e-24
    %v934 = vrsqrt.pop %v918
    %v935 = vrsqrt.pop %v919
    %v936 = vrsqrt.pop %v920
    %v937 = vrsqrt.pop %v921
    %v938 = vrsqrt.pop %v922
    %v939 = vrsqrt.pop %v923
    %v940 = vrsqrt.pop %v924
    %v941 = vrsqrt.pop %v925
    %v942 = vrsqrt.pop %v926
    %v943 = vrsqrt.pop %v927
    %v944 = vrsqrt.pop %v928
    %v945 = vrsqrt.pop %v929
    %v946 = vrsqrt.pop %v930
    %v947 = vrsqrt.pop %v931
    %v948 = vrsqrt.pop %v932
    %v949 = vrsqrt.pop %v933
    %v950 = vmul.f32 %v854, %v934
    %v951 = vmul.f32 %v855, %v935
    %v952 = vmul.f32 %v856, %v936
    %v953 = vmul.f32 %v857, %v937
    %v954 = vmul.f32 %v858, %v938
    %v955 = vmul.f32 %v859, %v939
    %v956 = vmul.f32 %v860, %v940
    %v957 = vmul.f32 %v861, %v941
    %v958 = vmul.f32 %v862, %v942
    %v959 = vmul.f32 %v863, %v943
    %v960 = vmul.f32 %v864, %v944
    %v961 = vmul.f32 %v865, %v945
    %v962 = vmul.f32 %v866, %v946
    %v963 = vmul.f32 %v867, %v947
    %v964 = vmul.f32 %v868, %v948
    %v965 = vmul.f32 %v869, %v949
    %966 = vmatprep.subr.mxu0 0.0
    %967 = vmatpush1.xpose.msra.mxu0 %v169
    %968 = vmatprep.subr.mxu0 0.0
    %969 = vmatpush1.xpose.msra.mxu0 %v170
    %970 = vmatprep.subr.mxu0 0.0
    %971 = vmatpush1.xpose.msra.mxu0 %v171
    %972 = vmatprep.subr.mxu0 0.0
    %973 = vmatpush1.xpose.msra.mxu0 %v172
    %974 = vmatprep.subr.mxu0 0.0
    %975 = vmatpush1.xpose.msra.mxu0 %v173
    %976 = vmatprep.subr.mxu0 0.0
    %977 = vmatpush1.xpose.msra.mxu0 %v174
    %978 = vmatprep.subr.mxu0 0.0
    %979 = vmatpush1.xpose.msra.mxu0 %v175
    %980 = vmatprep.subr.mxu0 0.0
    %981 = vmatpush1.xpose.msra.mxu0 %v176
    %982 = vmatprep.subr.mxu0 0.0
    %983 = vmatpush1.xpose.msra.mxu0 %v177
    %984 = vmatprep.subr.mxu0 0.0
    %985 = vmatpush1.xpose.msra.mxu0 %v178
    %986 = vmatprep.subr.mxu0 0.0
    %987 = vmatpush1.xpose.msra.mxu0 %v179
    %988 = vmatprep.subr.mxu0 0.0
    %989 = vmatpush1.xpose.msra.mxu0 %v180
    %990 = vmatprep.subr.mxu0 0.0
    %991 = vmatpush1.xpose.msra.mxu0 %v181
    %992 = vmatprep.subr.mxu0 0.0
    %993 = vmatpush1.xpose.msra.mxu0 %v182
    %994 = vmatprep.subr.mxu0 0.0
    %995 = vmatpush1.xpose.msra.mxu0 %v183
    %996 = vmatprep.subr.mxu0 0.0
    %997 = vmatpush1.xpose.msra.mxu0 %v184
    %998 = vmatprep.subr.mxu0 0.0
    %999 = vmatpush1.xpose.msra.mxu0 0.0
    %1000 = vmatprep.subr.mxu0 0.0
    %1001 = vmatpush1.xpose.msra.mxu0 0.0
    %1002 = vmatprep.subr.mxu0 0.0
    %1003 = vmatpush1.xpose.msra.mxu0 0.0
    %1004 = vmatprep.subr.mxu0 0.0
    %1005 = vmatpush1.xpose.msra.mxu0 0.0
    %1006 = vmatprep.subr.mxu0 0.0
    %1007 = vmatpush1.xpose.msra.mxu0 0.0
    %1008 = vmatprep.subr.mxu0 0.0
    %1009 = vmatpush1.xpose.msra.mxu0 0.0
    %1010 = vmatprep.subr.mxu0 0.0
    %1011 = vmatpush1.xpose.msra.mxu0 0.0
    %1012 = vmatprep.subr.mxu0 0.0
    %1013 = vmatpush1.xpose.msra.mxu0 0.0
    %1014 = vmatprep.subr.mxu0 0.0
    %1015 = vmatpush1.xpose.msra.mxu0 0.0
    %1016 = vmatprep.subr.mxu0 0.0
    %1017 = vmatpush1.xpose.msra.mxu0 0.0
    %1018 = vmatprep.subr.mxu0 0.0
    %1019 = vmatpush1.xpose.msra.mxu0 0.0
    %1020 = vmatprep.subr.mxu0 0.0
    %1021 = vmatpush1.xpose.msra.mxu0 0.0
    %1022 = vmatprep.subr.mxu0 0.0
    %1023 = vmatpush1.xpose.msra.mxu0 0.0
    %1024 = vmatprep.subr.mxu0 0.0
    %1025 = vmatpush1.xpose.msra.mxu0 0.0
    %1026 = vmatprep.subr.mxu0 0.0
    %1027 = vmatpush1.xpose.msra.mxu0 0.0
    %1028 = vmatprep.subr.mxu0 0.0
    %1029 = vmatpush1.xpose.msra.mxu0 0.0
    %1030 = vmatprep.mubr.f32.mxu0 0.0
    %1031 = vmatmul.mubr.f32.gmra.mrb[0].mxu0 %v950
    %v1032 = vpop.f32.mrb[0].mxu0
    %v1033 = vadd.f32 0.0, %v1032
    %v1034 = vpop.f32.mrb[0].mxu0
    %1035 = vmatprep.mubr.f32.mxu0 0.0
    %1036 = vmatmul.mubr.f32.gmra.mrb[0].mxu0 %v951
    %v1037 = vpop.f32.mrb[0].mxu0
    %v1038 = vadd.f32 0.0, %v1037
    %v1039 = vpop.f32.mrb[0].mxu0
    %1040 = vmatprep.mubr.f32.mxu0 0.0
    %1041 = vmatmul.mubr.f32.gmra.mrb[0].mxu0 %v952
    %v1042 = vpop.f32.mrb[0].mxu0
    %v1043 = vadd.f32 0.0, %v1042
    %v1044 = vpop.f32.mrb[0].mxu0
    %1045 = vmatprep.mubr.f32.mxu0 0.0
    %1046 = vmatmul.mubr.f32.gmra.mrb[0].mxu0 %v953
    %v1047 = vpop.f32.mrb[0].mxu0
    %v1048 = vadd.f32 0.0, %v1047
    %v1049 = vpop.f32.mrb[0].mxu0
    %1050 = vmatprep.mubr.f32.mxu0 0.0
    %1051 = vmatmul.mubr.f32.gmra.mrb[0].mxu0 %v954
    %v1052 = vpop.f32.mrb[0].mxu0
    %v1053 = vadd.f32 0.0, %v1052
    %v1054 = vpop.f32.mrb[0].mxu0
    %1055 = vmatprep.mubr.f32.mxu0 0.0
    %1056 = vmatmul.mubr.f32.gmra.mrb[0].mxu0 %v955
    %v1057 = vpop.f32.mrb[0].mxu0
    %v1058 = vadd.f32 0.0, %v1057
    %v1059 = vpop.f32.mrb[0].mxu0
    %1060 = vmatprep.mubr.f32.mxu0 0.0
    %1061 = vmatmul.mubr.f32.gmra.mrb[0].mxu0 %v956
    %v1062 = vpop.f32.mrb[0].mxu0
    %v1063 = vadd.f32 0.0, %v1062
    %v1064 = vpop.f32.mrb[0].mxu0
    %1065 = vmatprep.mubr.f32.mxu0 0.0
    %1066 = vmatmul.mubr.f32.gmra.mrb[0].mxu0 %v957
    %v1067 = vpop.f32.mrb[0].mxu0
    %v1068 = vadd.f32 0.0, %v1067
    %v1069 = vpop.f32.mrb[0].mxu0
    %1070 = vmatprep.mubr.f32.mxu0 0.0
    %1071 = vmatmul.mubr.f32.gmra.mrb[0].mxu0 %v958
    %v1072 = vpop.f32.mrb[0].mxu0
    %v1073 = vadd.f32 0.0, %v1072
    %v1074 = vpop.f32.mrb[0].mxu0
    %1075 = vmatprep.mubr.f32.mxu0 0.0
    %1076 = vmatmul.mubr.f32.gmra.mrb[0].mxu0 %v959
    %v1077 = vpop.f32.mrb[0].mxu0
    %v1078 = vadd.f32 0.0, %v1077
    %v1079 = vpop.f32.mrb[0].mxu0
    %1080 = vmatprep.mubr.f32.mxu0 0.0
    %1081 = vmatmul.mubr.f32.gmra.mrb[0].mxu0 %v960
    %v1082 = vpop.f32.mrb[0].mxu0
    %v1083 = vadd.f32 0.0, %v1082
    %v1084 = vpop.f32.mrb[0].mxu0
    %1085 = vmatprep.mubr.f32.mxu0 0.0
    %1086 = vmatmul.mubr.f32.gmra.mrb[0].mxu0 %v961
    %v1087 = vpop.f32.mrb[0].mxu0
    %v1088 = vadd.f32 0.0, %v1087
    %v1089 = vpop.f32.mrb[0].mxu0
    %1090 = vmatprep.mubr.f32.mxu0 0.0
    %1091 = vmatmul.mubr.f32.gmra.mrb[0].mxu0 %v962
    %v1092 = vpop.f32.mrb[0].mxu0
    %v1093 = vadd.f32 0.0, %v1092
    %v1094 = vpop.f32.mrb[0].mxu0
    %1095 = vmatprep.mubr.f32.mxu0 0.0
    %1096 = vmatmul.mubr.f32.gmra.mrb[0].mxu0 %v963
    %v1097 = vpop.f32.mrb[0].mxu0
    %v1098 = vadd.f32 0.0, %v1097
    %v1099 = vpop.f32.mrb[0].mxu0
    %1100 = vmatprep.mubr.f32.mxu0 0.0
    %1101 = vmatmul.mubr.f32.gmra.mrb[0].mxu0 %v964
    %v1102 = vpop.f32.mrb[0].mxu0
    %v1103 = vadd.f32 0.0, %v1102
    %v1104 = vpop.f32.mrb[0].mxu0
    %1105 = vmatprep.mubr.f32.mxu0 0.0
    %1106 = vmatmul.mubr.f32.gmra.mrb[0].mxu0 %v965
    %v1107 = vpop.f32.mrb[0].mxu0
    %v1108 = vadd.f32 0.0, %v1107
    %v1109 = vpop.f32.mrb[0].mxu0
    %1110 = vdwg.mxu0
    %v1111 = vmul.f32 %v1033, 10.0
    %v1112 = vmul.f32 %v1038, 10.0
    %v1113 = vmul.f32 %v1043, 10.0
    %v1114 = vmul.f32 %v1048, 10.0
    %v1115 = vmul.f32 %v1053, 10.0
    %v1116 = vmul.f32 %v1058, 10.0
    %v1117 = vmul.f32 %v1063, 10.0
    %v1118 = vmul.f32 %v1068, 10.0
    %v1119 = vmul.f32 %v1073, 10.0
    %v1120 = vmul.f32 %v1078, 10.0
    %v1121 = vmul.f32 %v1083, 10.0
    %v1122 = vmul.f32 %v1088, 10.0
    %v1123 = vmul.f32 %v1093, 10.0
    %v1124 = vmul.f32 %v1098, 10.0
    %v1125 = vmul.f32 %v1103, 10.0
    %v1126 = vmul.f32 %v1108, 10.0
    %v1127 = vsel %vm221, -1e+30, %v1111
    %v1128 = vsel %vm222, -1e+30, %v1112
    %v1129 = vsel %vm223, -1e+30, %v1113
    %v1130 = vsel %vm224, -1e+30, %v1114
    %v1131 = vsel %vm225, -1e+30, %v1115
    %v1132 = vsel %vm226, -1e+30, %v1116
    %v1133 = vsel %vm227, -1e+30, %v1117
    %v1134 = vsel %vm228, -1e+30, %v1118
    %v1135 = vsel %vm229, -1e+30, %v1119
    %v1136 = vsel %vm230, -1e+30, %v1120
    %v1137 = vsel %vm231, -1e+30, %v1121
    %v1138 = vsel %vm232, -1e+30, %v1122
    %v1139 = vsel %vm233, -1e+30, %v1123
    %v1140 = vsel %vm234, -1e+30, %v1124
    %v1141 = vsel %vm235, -1e+30, %v1125
    %v1142 = vsel %vm236, -1e+30, %v1126
    %v1143 = vmax.f32 %v1127, %v1131
    %v1144 = vmax.f32 %v1128, %v1132
    %v1145 = vmax.f32 %v1129, %v1133
    %v1146 = vmax.f32 %v1130, %v1134
    %v1147 = vmax.f32 %v1143, %v1135
    %v1148 = vmax.f32 %v1144, %v1136
    %v1149 = vmax.f32 %v1145, %v1137
    %v1150 = vmax.f32 %v1146, %v1138
    %v1151 = vmax.f32 %v1147, %v1139
    %v1152 = vmax.f32 %v1148, %v1140
    %v1153 = vmax.f32 %v1149, %v1141
    %v1154 = vmax.f32 %v1150, %v1142
    %v1155 = vmax.f32 %v1151, %v1152
    %v1156 = vmax.f32 %v1153, %v1154
    %v1157 = vmax.f32 %v1155, %v1156
    %1158 = vmax.xlane.f32.xlu0 %v1157
    %v1159 = vpop.xlane.xlu0 %1158
    %v1160 = vrot.slane %v1159, 4
    %v1161 = vmax.f32 %v1159, %v1160
    %v1162 = vrot.slane %v1161, 2
    %v1163 = vmax.f32 %v1161, %v1162
    %v1164 = vrot.slane %v1163, 1
    %v1165 = vmax.f32 %v1163, %v1164
    %s1166 = vtos %v1165
    %v1167 = vstv %s1166
    %v1168 = vsub.f32 %v1127, %v1167
    %v1169 = vsub.f32 %v1128, %v1167
    %v1170 = vsub.f32 %v1129, %v1167
    %v1171 = vsub.f32 %v1130, %v1167
    %v1172 = vsub.f32 %v1131, %v1167
    %v1173 = vsub.f32 %v1132, %v1167
    %v1174 = vsub.f32 %v1133, %v1167
    %v1175 = vsub.f32 %v1134, %v1167
    %v1176 = vsub.f32 %v1135, %v1167
    %v1177 = vsub.f32 %v1136, %v1167
    %v1178 = vsub.f32 %v1137, %v1167
    %v1179 = vsub.f32 %v1138, %v1167
    %v1180 = vsub.f32 %v1139, %v1167
    %v1181 = vsub.f32 %v1140, %v1167
    %v1182 = vsub.f32 %v1141, %v1167
    %v1183 = vsub.f32 %v1142, %v1167
    %v1184 = vmul.f32 %v1168, 1.442695
    %v1185 = vpow.pop %v1184
    %v1186 = vmul.f32 %v1169, 1.442695
    %v1187 = vpow.pop %v1186
    %v1188 = vmul.f32 %v1170, 1.442695
    %v1189 = vpow.pop %v1188
    %v1190 = vmul.f32 %v1171, 1.442695
    %v1191 = vpow.pop %v1190
    %v1192 = vmul.f32 %v1172, 1.442695
    %v1193 = vpow.pop %v1192
    %v1194 = vmul.f32 %v1173, 1.442695
    %v1195 = vpow.pop %v1194
    %v1196 = vmul.f32 %v1174, 1.442695
    %v1197 = vpow.pop %v1196
    %v1198 = vmul.f32 %v1175, 1.442695
    %v1199 = vpow.pop %v1198
    %v1200 = vmul.f32 %v1176, 1.442695
    %v1201 = vpow.pop %v1200
    %v1202 = vmul.f32 %v1177, 1.442695
    %v1203 = vpow.pop %v1202
    %v1204 = vmul.f32 %v1178, 1.442695
    %v1205 = vpow.pop %v1204
    %v1206 = vmul.f32 %v1179, 1.442695
    %v1207 = vpow.pop %v1206
    %v1208 = vmul.f32 %v1180, 1.442695
    %v1209 = vpow.pop %v1208
    %v1210 = vmul.f32 %v1181, 1.442695
    %v1211 = vpow.pop %v1210
    %v1212 = vmul.f32 %v1182, 1.442695
    %v1213 = vpow.pop %v1212
    %v1214 = vmul.f32 %v1183, 1.442695
    %v1215 = vpow.pop %v1214
    %1216 = vadd.xlane.f32.xlu0 %v1185
    %v1217 = vpop.xlane.xlu0 %1216
    %1218 = vadd.xlane.f32.xlu0 %v1187
    %v1219 = vpop.xlane.xlu0 %1218
    %1220 = vadd.xlane.f32.xlu0 %v1189
    %v1221 = vpop.xlane.xlu0 %1220
    %1222 = vadd.xlane.f32.xlu0 %v1191
    %v1223 = vpop.xlane.xlu0 %1222
    %1224 = vadd.xlane.f32.xlu0 %v1193
    %v1225 = vpop.xlane.xlu0 %1224
    %1226 = vadd.xlane.f32.xlu0 %v1195
    %v1227 = vpop.xlane.xlu0 %1226
    %1228 = vadd.xlane.f32.xlu0 %v1197
    %v1229 = vpop.xlane.xlu0 %1228
    %1230 = vadd.xlane.f32.xlu0 %v1199
    %v1231 = vpop.xlane.xlu0 %1230
    %1232 = vadd.xlane.f32.xlu0 %v1201
    %v1233 = vpop.xlane.xlu0 %1232
    %1234 = vadd.xlane.f32.xlu0 %v1203
    %v1235 = vpop.xlane.xlu0 %1234
    %1236 = vadd.xlane.f32.xlu0 %v1205
    %v1237 = vpop.xlane.xlu0 %1236
    %1238 = vadd.xlane.f32.xlu0 %v1207
    %v1239 = vpop.xlane.xlu0 %1238
    %1240 = vadd.xlane.f32.xlu0 %v1209
    %v1241 = vpop.xlane.xlu0 %1240
    %1242 = vadd.xlane.f32.xlu0 %v1211
    %v1243 = vpop.xlane.xlu0 %1242
    %1244 = vadd.xlane.f32.xlu0 %v1213
    %v1245 = vpop.xlane.xlu0 %1244
    %1246 = vadd.xlane.f32.xlu0 %v1215
    %v1247 = vpop.xlane.xlu0 %1246
    %v1248 = vadd.f32 %v1185, %v1187
    %v1249 = vadd.f32 %v1248, %v1189
    %v1250 = vadd.f32 %v1249, %v1191
    %v1251 = vadd.f32 %v1250, %v1193
    %v1252 = vadd.f32 %v1251, %v1195
    %v1253 = vadd.f32 %v1252, %v1197
    %v1254 = vadd.f32 %v1253, %v1199
    %v1255 = vadd.f32 %v1254, %v1201
    %v1256 = vadd.f32 %v1255, %v1203
    %v1257 = vadd.f32 %v1256, %v1205
    %v1258 = vadd.f32 %v1257, %v1207
    %v1259 = vadd.f32 %v1258, %v1209
    %v1260 = vadd.f32 %v1259, %v1211
    %v1261 = vadd.f32 %v1260, %v1213
    %v1262 = vadd.f32 %v1261, %v1215
    %v1263 = vrot.slane %v1262, 4
    %v1264 = vadd.f32 %v1262, %v1263
    %v1265 = vrot.slane %v1264, 2
    %v1266 = vadd.f32 %v1264, %v1265
    %v1267 = vrot.slane %v1266, 1
    %v1268 = vadd.f32 %v1266, %v1267
    %vm1269 = vcmp.gt.f32.partialorder %v1217, 0.0
    %vm1270 = vcmp.gt.f32.partialorder %v1219, 0.0
    %vm1271 = vcmp.gt.f32.partialorder %v1221, 0.0
    %vm1272 = vcmp.gt.f32.partialorder %v1223, 0.0
    %vm1273 = vcmp.gt.f32.partialorder %v1225, 0.0
    %vm1274 = vcmp.gt.f32.partialorder %v1227, 0.0
    %vm1275 = vcmp.gt.f32.partialorder %v1229, 0.0
    %vm1276 = vcmp.gt.f32.partialorder %v1231, 0.0
    %vm1277 = vcmp.gt.f32.partialorder %v1233, 0.0
    %vm1278 = vcmp.gt.f32.partialorder %v1235, 0.0
    %vm1279 = vcmp.gt.f32.partialorder %v1237, 0.0
    %vm1280 = vcmp.gt.f32.partialorder %v1239, 0.0
    %vm1281 = vcmp.gt.f32.partialorder %v1241, 0.0
    %vm1282 = vcmp.gt.f32.partialorder %v1243, 0.0
    %vm1283 = vcmp.gt.f32.partialorder %v1245, 0.0
    %vm1284 = vcmp.gt.f32.partialorder %v1247, 0.0
    %v1285 = vmax.f32 %v1217, 1e-37
    %v1286 = vmax.f32 %v1219, 1e-37
    %v1287 = vmax.f32 %v1221, 1e-37
    %v1288 = vmax.f32 %v1223, 1e-37
    %v1289 = vmax.f32 %v1225, 1e-37
    %v1290 = vmax.f32 %v1227, 1e-37
    %v1291 = vmax.f32 %v1229, 1e-37
    %v1292 = vmax.f32 %v1231, 1e-37
    %v1293 = vmax.f32 %v1233, 1e-37
    %v1294 = vmax.f32 %v1235, 1e-37
    %v1295 = vmax.f32 %v1237, 1e-37
    %v1296 = vmax.f32 %v1239, 1e-37
    %v1297 = vmax.f32 %v1241, 1e-37
    %v1298 = vmax.f32 %v1243, 1e-37
    %v1299 = vmax.f32 %v1245, 1e-37
    %v1300 = vmax.f32 %v1247, 1e-37
    %v1301 = vlog2.pop %v1285
    %v1302 = vmul.f32 %v1301, 0.6931472
    %v1303 = vlog2.pop %v1286
    %v1304 = vmul.f32 %v1303, 0.6931472
    %v1305 = vlog2.pop %v1287
    %v1306 = vmul.f32 %v1305, 0.6931472
    %v1307 = vlog2.pop %v1288
    %v1308 = vmul.f32 %v1307, 0.6931472
    %v1309 = vlog2.pop %v1289
    %v1310 = vmul.f32 %v1309, 0.6931472
    %v1311 = vlog2.pop %v1290
    %v1312 = vmul.f32 %v1311, 0.6931472
    %v1313 = vlog2.pop %v1291
    %v1314 = vmul.f32 %v1313, 0.6931472
    %v1315 = vlog2.pop %v1292
    %v1316 = vmul.f32 %v1315, 0.6931472
    %v1317 = vlog2.pop %v1293
    %v1318 = vmul.f32 %v1317, 0.6931472
    %v1319 = vlog2.pop %v1294
    %v1320 = vmul.f32 %v1319, 0.6931472
    %v1321 = vlog2.pop %v1295
    %v1322 = vmul.f32 %v1321, 0.6931472
    %v1323 = vlog2.pop %v1296
    %v1324 = vmul.f32 %v1323, 0.6931472
    %v1325 = vlog2.pop %v1297
    %v1326 = vmul.f32 %v1325, 0.6931472
    %v1327 = vlog2.pop %v1298
    %v1328 = vmul.f32 %v1327, 0.6931472
    %v1329 = vlog2.pop %v1299
    %v1330 = vmul.f32 %v1329, 0.6931472
    %v1331 = vlog2.pop %v1300
    %v1332 = vmul.f32 %v1331, 0.6931472
    %v1333 = vadd.f32 %v1167, %v1302
    %v1334 = vadd.f32 %v1167, %v1304
    %v1335 = vadd.f32 %v1167, %v1306
    %v1336 = vadd.f32 %v1167, %v1308
    %v1337 = vadd.f32 %v1167, %v1310
    %v1338 = vadd.f32 %v1167, %v1312
    %v1339 = vadd.f32 %v1167, %v1314
    %v1340 = vadd.f32 %v1167, %v1316
    %v1341 = vadd.f32 %v1167, %v1318
    %v1342 = vadd.f32 %v1167, %v1320
    %v1343 = vadd.f32 %v1167, %v1322
    %v1344 = vadd.f32 %v1167, %v1324
    %v1345 = vadd.f32 %v1167, %v1326
    %v1346 = vadd.f32 %v1167, %v1328
    %v1347 = vadd.f32 %v1167, %v1330
    %v1348 = vadd.f32 %v1167, %v1332
    %v1349 = vsel %vm1269, %v1333, 0.0
    %v1350 = vsel %vm1270, %v1334, 0.0
    %v1351 = vsel %vm1271, %v1335, 0.0
    %v1352 = vsel %vm1272, %v1336, 0.0
    %v1353 = vsel %vm1273, %v1337, 0.0
    %v1354 = vsel %vm1274, %v1338, 0.0
    %v1355 = vsel %vm1275, %v1339, 0.0
    %v1356 = vsel %vm1276, %v1340, 0.0
    %v1357 = vsel %vm1277, %v1341, 0.0
    %v1358 = vsel %vm1278, %v1342, 0.0
    %v1359 = vsel %vm1279, %v1343, 0.0
    %v1360 = vsel %vm1280, %v1344, 0.0
    %v1361 = vsel %vm1281, %v1345, 0.0
    %v1362 = vsel %vm1282, %v1346, 0.0
    %v1363 = vsel %vm1283, %v1347, 0.0
    %v1364 = vsel %vm1284, %v1348, 0.0
    %v1365 = vsel %vm748, %v1349, 0.0
    %v1366 = vsel %vm748, %v1350, 0.0
    %v1367 = vadd.f32 %v1365, %v1366
    %v1368 = vsel %vm748, %v1351, 0.0
    %v1369 = vadd.f32 %v1367, %v1368
    %v1370 = vsel %vm748, %v1352, 0.0
    %v1371 = vadd.f32 %v1369, %v1370
    %v1372 = vsel %vm748, %v1353, 0.0
    %v1373 = vadd.f32 %v1371, %v1372
    %v1374 = vsel %vm748, %v1354, 0.0
    %v1375 = vadd.f32 %v1373, %v1374
    %v1376 = vsel %vm748, %v1355, 0.0
    %v1377 = vadd.f32 %v1375, %v1376
    %v1378 = vsel %vm748, %v1356, 0.0
    %v1379 = vadd.f32 %v1377, %v1378
    %v1380 = vsel %vm748, %v1357, 0.0
    %v1381 = vadd.f32 %v1379, %v1380
    %v1382 = vsel %vm748, %v1358, 0.0
    %v1383 = vadd.f32 %v1381, %v1382
    %v1384 = vsel %vm748, %v1359, 0.0
    %v1385 = vadd.f32 %v1383, %v1384
    %v1386 = vsel %vm748, %v1360, 0.0
    %v1387 = vadd.f32 %v1385, %v1386
    %v1388 = vsel %vm748, %v1361, 0.0
    %v1389 = vadd.f32 %v1387, %v1388
    %v1390 = vsel %vm748, %v1362, 0.0
    %v1391 = vadd.f32 %v1389, %v1390
    %v1392 = vsel %vm748, %v1363, 0.0
    %v1393 = vadd.f32 %v1391, %v1392
    %v1394 = vsel %vm748, %v1364, 0.0
    %v1395 = vadd.f32 %v1393, %v1394
    %1396 = vadd.xlane.f32.xlu0 %v1395
    %v1397 = vpop.xlane.xlu0 %1396
    %v1398 = vrot.slane %v1397, 4
    %v1399 = vadd.f32 %v1397, %v1398
    %v1400 = vrot.slane %v1399, 2
    %v1401 = vadd.f32 %v1399, %v1400
    %v1402 = vrot.slane %v1401, 1
    %v1403 = vadd.f32 %v1401, %v1402
    %s1404 = vtos %v1403
    %vm1405 = vcmp.gt.f32.partialorder %v1268, 0.0
    %v1406 = vmax.f32 %v1268, 1e-37
    %v1407 = vlog2.pop %v1406
    %v1408 = vmul.f32 %v1407, 0.6931472
    %v1409 = vadd.f32 %v1167, %v1408
    %v1410 = vsel %vm1405, %v1409, 0.0
    %v1411 = vsel %vm795, %v1410, 0.0
    %1412 = vadd.xlane.f32.xlu0 %v1411
    %v1413 = vpop.xlane.xlu0 %1412
    %v1414 = vrot.slane %v1413, 4
    %v1415 = vadd.f32 %v1413, %v1414
    %v1416 = vrot.slane %v1415, 2
    %v1417 = vadd.f32 %v1415, %v1416
    %v1418 = vrot.slane %v1417, 1
    %v1419 = vadd.f32 %v1417, %v1418
    %s1420 = vtos %v1419
    %v1421 = vmul.f32 %v950, %v169
    %v1422 = vmul.f32 %v951, %v170
    %v1423 = vmul.f32 %v952, %v171
    %v1424 = vmul.f32 %v953, %v172
    %v1425 = vmul.f32 %v954, %v173
    %v1426 = vmul.f32 %v955, %v174
    %v1427 = vmul.f32 %v956, %v175
    %v1428 = vmul.f32 %v957, %v176
    %v1429 = vmul.f32 %v958, %v177
    %v1430 = vmul.f32 %v959, %v178
    %v1431 = vmul.f32 %v960, %v179
    %v1432 = vmul.f32 %v961, %v180
    %v1433 = vmul.f32 %v962, %v181
    %v1434 = vmul.f32 %v963, %v182
    %v1435 = vmul.f32 %v964, %v183
    %v1436 = vmul.f32 %v965, %v184
    %v1437 = vadd.f32 %v1421, %v1422
    %v1438 = vadd.f32 %v1437, %v1423
    %v1439 = vadd.f32 %v1438, %v1424
    %v1440 = vadd.f32 %v1439, %v1425
    %v1441 = vadd.f32 %v1440, %v1426
    %v1442 = vadd.f32 %v1441, %v1427
    %v1443 = vadd.f32 %v1442, %v1428
    %v1444 = vadd.f32 %v1443, %v1429
    %v1445 = vadd.f32 %v1444, %v1430
    %v1446 = vadd.f32 %v1445, %v1431
    %v1447 = vadd.f32 %v1446, %v1432
    %v1448 = vadd.f32 %v1447, %v1433
    %v1449 = vadd.f32 %v1448, %v1434
    %v1450 = vadd.f32 %v1449, %v1435
    %v1451 = vadd.f32 %v1450, %v1436
    %1452 = vadd.xlane.f32.xlu0 %v1451
    %v1453 = vpop.xlane.xlu0 %1452
    %v1454 = vrot.slane %v1453, 4
    %v1455 = vadd.f32 %v1453, %v1454
    %v1456 = vrot.slane %v1455, 2
    %v1457 = vadd.f32 %v1455, %v1456
    %v1458 = vrot.slane %v1457, 1
    %v1459 = vadd.f32 %v1457, %v1458
    %s1460 = vtos %v1459
    %s1461 = smul.f32 %s1460, 10.0
    %s1462 = sadd.f32 %s1404, %s1420
    %s1463 = smul.f32 %s1461, 2.0
    %s1464 = ssub.f32 %s1462, %s1463
    %v1465 = vrcp.pop 8.0
    %s1466 = vtos %v1465
    %s1467 = smul.f32 %s1464, %s1466
    %s1468 = sadd.f32 %s853, %s1467
    %v1469 = vld [vmem:[#allocation7] sm:$0xff]
    %v1470 = vld [vmem:[#allocation7 + $0x8] sm:$0xff]
    %v1471 = vld [vmem:[#allocation7 + $0x10] sm:$0xff]
    %v1472 = vld [vmem:[#allocation7 + $0x18] sm:$0xff]
    %v1473 = vld [vmem:[#allocation7 + $0x20] sm:$0xff]
    %v1474 = vld [vmem:[#allocation7 + $0x28] sm:$0xff]
    %v1475 = vld [vmem:[#allocation7 + $0x30] sm:$0xff]
    %v1476 = vld [vmem:[#allocation7 + $0x38] sm:$0xff]
    %v1477 = vld [vmem:[#allocation7 + $0x40] sm:$0xff]
    %v1478 = vld [vmem:[#allocation7 + $0x48] sm:$0xff]
    %v1479 = vld [vmem:[#allocation7 + $0x50] sm:$0xff]
    %v1480 = vld [vmem:[#allocation7 + $0x58] sm:$0xff]
    %v1481 = vld [vmem:[#allocation7 + $0x60] sm:$0xff]
    %v1482 = vld [vmem:[#allocation7 + $0x68] sm:$0xff]
    %v1483 = vld [vmem:[#allocation7 + $0x70] sm:$0xff]
    %v1484 = vld [vmem:[#allocation7 + $0x78] sm:$0xff]
    %v1485 = vmul.f32 %v1469, %v1469
    %v1486 = vmul.f32 %v1470, %v1470
    %v1487 = vmul.f32 %v1471, %v1471
    %v1488 = vmul.f32 %v1472, %v1472
    %v1489 = vmul.f32 %v1473, %v1473
    %v1490 = vmul.f32 %v1474, %v1474
    %v1491 = vmul.f32 %v1475, %v1475
    %v1492 = vmul.f32 %v1476, %v1476
    %v1493 = vmul.f32 %v1477, %v1477
    %v1494 = vmul.f32 %v1478, %v1478
    %v1495 = vmul.f32 %v1479, %v1479
    %v1496 = vmul.f32 %v1480, %v1480
    %v1497 = vmul.f32 %v1481, %v1481
    %v1498 = vmul.f32 %v1482, %v1482
    %v1499 = vmul.f32 %v1483, %v1483
    %v1500 = vmul.f32 %v1484, %v1484
    %1501 = vadd.xlane.f32.xlu0 %v1485
    %v1502 = vpop.xlane.xlu0 %1501
    %1503 = vadd.xlane.f32.xlu0 %v1486
    %v1504 = vpop.xlane.xlu0 %1503
    %1505 = vadd.xlane.f32.xlu0 %v1487
    %v1506 = vpop.xlane.xlu0 %1505
    %1507 = vadd.xlane.f32.xlu0 %v1488
    %v1508 = vpop.xlane.xlu0 %1507
    %1509 = vadd.xlane.f32.xlu0 %v1489
    %v1510 = vpop.xlane.xlu0 %1509
    %1511 = vadd.xlane.f32.xlu0 %v1490
    %v1512 = vpop.xlane.xlu0 %1511
    %1513 = vadd.xlane.f32.xlu0 %v1491
    %v1514 = vpop.xlane.xlu0 %1513
    %1515 = vadd.xlane.f32.xlu0 %v1492
    %v1516 = vpop.xlane.xlu0 %1515
    %1517 = vadd.xlane.f32.xlu0 %v1493
    %v1518 = vpop.xlane.xlu0 %1517
    %1519 = vadd.xlane.f32.xlu0 %v1494
    %v1520 = vpop.xlane.xlu0 %1519
    %1521 = vadd.xlane.f32.xlu0 %v1495
    %v1522 = vpop.xlane.xlu0 %1521
    %1523 = vadd.xlane.f32.xlu0 %v1496
    %v1524 = vpop.xlane.xlu0 %1523
    %1525 = vadd.xlane.f32.xlu0 %v1497
    %v1526 = vpop.xlane.xlu0 %1525
    %1527 = vadd.xlane.f32.xlu0 %v1498
    %v1528 = vpop.xlane.xlu0 %1527
    %1529 = vadd.xlane.f32.xlu0 %v1499
    %v1530 = vpop.xlane.xlu0 %1529
    %1531 = vadd.xlane.f32.xlu0 %v1500
    %v1532 = vpop.xlane.xlu0 %1531
    %v1533 = vmax.f32 %v1502, 1e-24
    %v1534 = vmax.f32 %v1504, 1e-24
    %v1535 = vmax.f32 %v1506, 1e-24
    %v1536 = vmax.f32 %v1508, 1e-24
    %v1537 = vmax.f32 %v1510, 1e-24
    %v1538 = vmax.f32 %v1512, 1e-24
    %v1539 = vmax.f32 %v1514, 1e-24
    %v1540 = vmax.f32 %v1516, 1e-24
    %v1541 = vmax.f32 %v1518, 1e-24
    %v1542 = vmax.f32 %v1520, 1e-24
    %v1543 = vmax.f32 %v1522, 1e-24
    %v1544 = vmax.f32 %v1524, 1e-24
    %v1545 = vmax.f32 %v1526, 1e-24
    %v1546 = vmax.f32 %v1528, 1e-24
    %v1547 = vmax.f32 %v1530, 1e-24
    %v1548 = vmax.f32 %v1532, 1e-24
    %v1549 = vrsqrt.pop %v1533
    %v1550 = vrsqrt.pop %v1534
    %v1551 = vrsqrt.pop %v1535
    %v1552 = vrsqrt.pop %v1536
    %v1553 = vrsqrt.pop %v1537
    %v1554 = vrsqrt.pop %v1538
    %v1555 = vrsqrt.pop %v1539
    %v1556 = vrsqrt.pop %v1540
    %v1557 = vrsqrt.pop %v1541
    %v1558 = vrsqrt.pop %v1542
    %v1559 = vrsqrt.pop %v1543
    %v1560 = vrsqrt.pop %v1544
    %v1561 = vrsqrt.pop %v1545
    %v1562 = vrsqrt.pop %v1546
    %v1563 = vrsqrt.pop %v1547
    %v1564 = vrsqrt.pop %v1548
    %v1565 = vmul.f32 %v1469, %v1549
    %v1566 = vmul.f32 %v1470, %v1550
    %v1567 = vmul.f32 %v1471, %v1551
    %v1568 = vmul.f32 %v1472, %v1552
    %v1569 = vmul.f32 %v1473, %v1553
    %v1570 = vmul.f32 %v1474, %v1554
    %v1571 = vmul.f32 %v1475, %v1555
    %v1572 = vmul.f32 %v1476, %v1556
    %v1573 = vmul.f32 %v1477, %v1557
    %v1574 = vmul.f32 %v1478, %v1558
    %v1575 = vmul.f32 %v1479, %v1559
    %v1576 = vmul.f32 %v1480, %v1560
    %v1577 = vmul.f32 %v1481, %v1561
    %v1578 = vmul.f32 %v1482, %v1562
    %v1579 = vmul.f32 %v1483, %v1563
    %v1580 = vmul.f32 %v1484, %v1564
    %1581 = vmatprep.subr.mxu0 0.0
    %1582 = vmatpush1.xpose.msra.mxu0 %v169
    %1583 = vmatprep.subr.mxu0 0.0
    %1584 = vmatpush1.xpose.msra.mxu0 %v170
    %1585 = vmatprep.subr.mxu0 0.0
    %1586 = vmatpush1.xpose.msra.mxu0 %v171
    %1587 = vmatprep.subr.mxu0 0.0
    %1588 = vmatpush1.xpose.msra.mxu0 %v172
    %1589 = vmatprep.subr.mxu0 0.0
    %1590 = vmatpush1.xpose.msra.mxu0 %v173
    %1591 = vmatprep.subr.mxu0 0.0
    %1592 = vmatpush1.xpose.msra.mxu0 %v174
    %1593 = vmatprep.subr.mxu0 0.0
    %1594 = vmatpush1.xpose.msra.mxu0 %v175
    %1595 = vmatprep.subr.mxu0 0.0
    %1596 = vmatpush1.xpose.msra.mxu0 %v176
    %1597 = vmatprep.subr.mxu0 0.0
    %1598 = vmatpush1.xpose.msra.mxu0 %v177
    %1599 = vmatprep.subr.mxu0 0.0
    %1600 = vmatpush1.xpose.msra.mxu0 %v178
    %1601 = vmatprep.subr.mxu0 0.0
    %1602 = vmatpush1.xpose.msra.mxu0 %v179
    %1603 = vmatprep.subr.mxu0 0.0
    %1604 = vmatpush1.xpose.msra.mxu0 %v180
    %1605 = vmatprep.subr.mxu0 0.0
    %1606 = vmatpush1.xpose.msra.mxu0 %v181
    %1607 = vmatprep.subr.mxu0 0.0
    %1608 = vmatpush1.xpose.msra.mxu0 %v182
    %1609 = vmatprep.subr.mxu0 0.0
    %1610 = vmatpush1.xpose.msra.mxu0 %v183
    %1611 = vmatprep.subr.mxu0 0.0
    %1612 = vmatpush1.xpose.msra.mxu0 %v184
    %1613 = vmatprep.subr.mxu0 0.0
    %1614 = vmatpush1.xpose.msra.mxu0 0.0
    %1615 = vmatprep.subr.mxu0 0.0
    %1616 = vmatpush1.xpose.msra.mxu0 0.0
    %1617 = vmatprep.subr.mxu0 0.0
    %1618 = vmatpush1.xpose.msra.mxu0 0.0
    %1619 = vmatprep.subr.mxu0 0.0
    %1620 = vmatpush1.xpose.msra.mxu0 0.0
    %1621 = vmatprep.subr.mxu0 0.0
    %1622 = vmatpush1.xpose.msra.mxu0 0.0
    %1623 = vmatprep.subr.mxu0 0.0
    %1624 = vmatpush1.xpose.msra.mxu0 0.0
    %1625 = vmatprep.subr.mxu0 0.0
    %1626 = vmatpush1.xpose.msra.mxu0 0.0
    %1627 = vmatprep.subr.mxu0 0.0
    %1628 = vmatpush1.xpose.msra.mxu0 0.0
    %1629 = vmatprep.subr.mxu0 0.0
    %1630 = vmatpush1.xpose.msra.mxu0 0.0
    %1631 = vmatprep.subr.mxu0 0.0
    %1632 = vmatpush1.xpose.msra.mxu0 0.0
    %1633 = vmatprep.subr.mxu0 0.0
    %1634 = vmatpush1.xpose.msra.mxu0 0.0
    %1635 = vmatprep.subr.mxu0 0.0
    %1636 = vmatpush1.xpose.msra.mxu0 0.0
    %1637 = vmatprep.subr.mxu0 0.0
    %1638 = vmatpush1.xpose.msra.mxu0 0.0
    %1639 = vmatprep.subr.mxu0 0.0
    %1640 = vmatpush1.xpose.msra.mxu0 0.0
    %1641 = vmatprep.subr.mxu0 0.0
    %1642 = vmatpush1.xpose.msra.mxu0 0.0
    %1643 = vmatprep.subr.mxu0 0.0
    %1644 = vmatpush1.xpose.msra.mxu0 0.0
    %1645 = vmatprep.mubr.f32.mxu0 0.0
    %1646 = vmatmul.mubr.f32.gmra.mrb[0].mxu0 %v1565
    %v1647 = vpop.f32.mrb[0].mxu0
    %v1648 = vadd.f32 0.0, %v1647
    %v1649 = vpop.f32.mrb[0].mxu0
    %1650 = vmatprep.mubr.f32.mxu0 0.0
    %1651 = vmatmul.mubr.f32.gmra.mrb[0].mxu0 %v1566
    %v1652 = vpop.f32.mrb[0].mxu0
    %v1653 = vadd.f32 0.0, %v1652
    %v1654 = vpop.f32.mrb[0].mxu0
    %1655 = vmatprep.mubr.f32.mxu0 0.0
    %1656 = vmatmul.mubr.f32.gmra.mrb[0].mxu0 %v1567
    %v1657 = vpop.f32.mrb[0].mxu0
    %v1658 = vadd.f32 0.0, %v1657
    %v1659 = vpop.f32.mrb[0].mxu0
    %1660 = vmatprep.mubr.f32.mxu0 0.0
    %1661 = vmatmul.mubr.f32.gmra.mrb[0].mxu0 %v1568
    %v1662 = vpop.f32.mrb[0].mxu0
    %v1663 = vadd.f32 0.0, %v1662
    %v1664 = vpop.f32.mrb[0].mxu0
    %1665 = vmatprep.mubr.f32.mxu0 0.0
    %1666 = vmatmul.mubr.f32.gmra.mrb[0].mxu0 %v1569
    %v1667 = vpop.f32.mrb[0].mxu0
    %v1668 = vadd.f32 0.0, %v1667
    %v1669 = vpop.f32.mrb[0].mxu0
    %1670 = vmatprep.mubr.f32.mxu0 0.0
    %1671 = vmatmul.mubr.f32.gmra.mrb[0].mxu0 %v1570
    %v1672 = vpop.f32.mrb[0].mxu0
    %v1673 = vadd.f32 0.0, %v1672
    %v1674 = vpop.f32.mrb[0].mxu0
    %1675 = vmatprep.mubr.f32.mxu0 0.0
    %1676 = vmatmul.mubr.f32.gmra.mrb[0].mxu0 %v1571
    %v1677 = vpop.f32.mrb[0].mxu0
    %v1678 = vadd.f32 0.0, %v1677
    %v1679 = vpop.f32.mrb[0].mxu0
    %1680 = vmatprep.mubr.f32.mxu0 0.0
    %1681 = vmatmul.mubr.f32.gmra.mrb[0].mxu0 %v1572
    %v1682 = vpop.f32.mrb[0].mxu0
    %v1683 = vadd.f32 0.0, %v1682
    %v1684 = vpop.f32.mrb[0].mxu0
    %1685 = vmatprep.mubr.f32.mxu0 0.0
    %1686 = vmatmul.mubr.f32.gmra.mrb[0].mxu0 %v1573
    %v1687 = vpop.f32.mrb[0].mxu0
    %v1688 = vadd.f32 0.0, %v1687
    %v1689 = vpop.f32.mrb[0].mxu0
    %1690 = vmatprep.mubr.f32.mxu0 0.0
    %1691 = vmatmul.mubr.f32.gmra.mrb[0].mxu0 %v1574
    %v1692 = vpop.f32.mrb[0].mxu0
    %v1693 = vadd.f32 0.0, %v1692
    %v1694 = vpop.f32.mrb[0].mxu0
    %1695 = vmatprep.mubr.f32.mxu0 0.0
    %1696 = vmatmul.mubr.f32.gmra.mrb[0].mxu0 %v1575
    %v1697 = vpop.f32.mrb[0].mxu0
    %v1698 = vadd.f32 0.0, %v1697
    %v1699 = vpop.f32.mrb[0].mxu0
    %1700 = vmatprep.mubr.f32.mxu0 0.0
    %1701 = vmatmul.mubr.f32.gmra.mrb[0].mxu0 %v1576
    %v1702 = vpop.f32.mrb[0].mxu0
    %v1703 = vadd.f32 0.0, %v1702
    %v1704 = vpop.f32.mrb[0].mxu0
    %1705 = vmatprep.mubr.f32.mxu0 0.0
    %1706 = vmatmul.mubr.f32.gmra.mrb[0].mxu0 %v1577
    %v1707 = vpop.f32.mrb[0].mxu0
    %v1708 = vadd.f32 0.0, %v1707
    %v1709 = vpop.f32.mrb[0].mxu0
    %1710 = vmatprep.mubr.f32.mxu0 0.0
    %1711 = vmatmul.mubr.f32.gmra.mrb[0].mxu0 %v1578
    %v1712 = vpop.f32.mrb[0].mxu0
    %v1713 = vadd.f32 0.0, %v1712
    %v1714 = vpop.f32.mrb[0].mxu0
    %1715 = vmatprep.mubr.f32.mxu0 0.0
    %1716 = vmatmul.mubr.f32.gmra.mrb[0].mxu0 %v1579
    %v1717 = vpop.f32.mrb[0].mxu0
    %v1718 = vadd.f32 0.0, %v1717
    %v1719 = vpop.f32.mrb[0].mxu0
    %1720 = vmatprep.mubr.f32.mxu0 0.0
    %1721 = vmatmul.mubr.f32.gmra.mrb[0].mxu0 %v1580
    %v1722 = vpop.f32.mrb[0].mxu0
    %v1723 = vadd.f32 0.0, %v1722
    %v1724 = vpop.f32.mrb[0].mxu0
    %1725 = vdwg.mxu0
    %v1726 = vmul.f32 %v1648, 10.0
    %v1727 = vmul.f32 %v1653, 10.0
    %v1728 = vmul.f32 %v1658, 10.0
    %v1729 = vmul.f32 %v1663, 10.0
    %v1730 = vmul.f32 %v1668, 10.0
    %v1731 = vmul.f32 %v1673, 10.0
    %v1732 = vmul.f32 %v1678, 10.0
    %v1733 = vmul.f32 %v1683, 10.0
    %v1734 = vmul.f32 %v1688, 10.0
    %v1735 = vmul.f32 %v1693, 10.0
    %v1736 = vmul.f32 %v1698, 10.0
    %v1737 = vmul.f32 %v1703, 10.0
    %v1738 = vmul.f32 %v1708, 10.0
    %v1739 = vmul.f32 %v1713, 10.0
    %v1740 = vmul.f32 %v1718, 10.0
    %v1741 = vmul.f32 %v1723, 10.0
    %v1742 = vsel %vm221, -1e+30, %v1726
    %v1743 = vsel %vm222, -1e+30, %v1727
    %v1744 = vsel %vm223, -1e+30, %v1728
    %v1745 = vsel %vm224, -1e+30, %v1729
    %v1746 = vsel %vm225, -1e+30, %v1730
    %v1747 = vsel %vm226, -1e+30, %v1731
    %v1748 = vsel %vm227, -1e+30, %v1732
    %v1749 = vsel %vm228, -1e+30, %v1733
    %v1750 = vsel %vm229, -1e+30, %v1734
    %v1751 = vsel %vm230, -1e+30, %v1735
    %v1752 = vsel %vm231, -1e+30, %v1736
    %v1753 = vsel %vm232, -1e+30, %v1737
    %v1754 = vsel %vm233, -1e+30, %v1738
    %v1755 = vsel %vm234, -1e+30, %v1739
    %v1756 = vsel %vm235, -1e+30, %v1740
    %v1757 = vsel %vm236, -1e+30, %v1741
    %v1758 = vmax.f32 %v1742, %v1746
    %v1759 = vmax.f32 %v1743, %v1747
    %v1760 = vmax.f32 %v1744, %v1748
    %v1761 = vmax.f32 %v1745, %v1749
    %v1762 = vmax.f32 %v1758, %v1750
    %v1763 = vmax.f32 %v1759, %v1751
    %v1764 = vmax.f32 %v1760, %v1752
    %v1765 = vmax.f32 %v1761, %v1753
    %v1766 = vmax.f32 %v1762, %v1754
    %v1767 = vmax.f32 %v1763, %v1755
    %v1768 = vmax.f32 %v1764, %v1756
    %v1769 = vmax.f32 %v1765, %v1757
    %v1770 = vmax.f32 %v1766, %v1767
    %v1771 = vmax.f32 %v1768, %v1769
    %v1772 = vmax.f32 %v1770, %v1771
    %1773 = vmax.xlane.f32.xlu0 %v1772
    %v1774 = vpop.xlane.xlu0 %1773
    %v1775 = vrot.slane %v1774, 4
    %v1776 = vmax.f32 %v1774, %v1775
    %v1777 = vrot.slane %v1776, 2
    %v1778 = vmax.f32 %v1776, %v1777
    %v1779 = vrot.slane %v1778, 1
    %v1780 = vmax.f32 %v1778, %v1779
    %s1781 = vtos %v1780
    %v1782 = vstv %s1781
    %v1783 = vsub.f32 %v1742, %v1782
    %v1784 = vsub.f32 %v1743, %v1782
    %v1785 = vsub.f32 %v1744, %v1782
    %v1786 = vsub.f32 %v1745, %v1782
    %v1787 = vsub.f32 %v1746, %v1782
    %v1788 = vsub.f32 %v1747, %v1782
    %v1789 = vsub.f32 %v1748, %v1782
    %v1790 = vsub.f32 %v1749, %v1782
    %v1791 = vsub.f32 %v1750, %v1782
    %v1792 = vsub.f32 %v1751, %v1782
    %v1793 = vsub.f32 %v1752, %v1782
    %v1794 = vsub.f32 %v1753, %v1782
    %v1795 = vsub.f32 %v1754, %v1782
    %v1796 = vsub.f32 %v1755, %v1782
    %v1797 = vsub.f32 %v1756, %v1782
    %v1798 = vsub.f32 %v1757, %v1782
    %v1799 = vmul.f32 %v1783, 1.442695
    %v1800 = vpow.pop %v1799
    %v1801 = vmul.f32 %v1784, 1.442695
    %v1802 = vpow.pop %v1801
    %v1803 = vmul.f32 %v1785, 1.442695
    %v1804 = vpow.pop %v1803
    %v1805 = vmul.f32 %v1786, 1.442695
    %v1806 = vpow.pop %v1805
    %v1807 = vmul.f32 %v1787, 1.442695
    %v1808 = vpow.pop %v1807
    %v1809 = vmul.f32 %v1788, 1.442695
    %v1810 = vpow.pop %v1809
    %v1811 = vmul.f32 %v1789, 1.442695
    %v1812 = vpow.pop %v1811
    %v1813 = vmul.f32 %v1790, 1.442695
    %v1814 = vpow.pop %v1813
    %v1815 = vmul.f32 %v1791, 1.442695
    %v1816 = vpow.pop %v1815
    %v1817 = vmul.f32 %v1792, 1.442695
    %v1818 = vpow.pop %v1817
    %v1819 = vmul.f32 %v1793, 1.442695
    %v1820 = vpow.pop %v1819
    %v1821 = vmul.f32 %v1794, 1.442695
    %v1822 = vpow.pop %v1821
    %v1823 = vmul.f32 %v1795, 1.442695
    %v1824 = vpow.pop %v1823
    %v1825 = vmul.f32 %v1796, 1.442695
    %v1826 = vpow.pop %v1825
    %v1827 = vmul.f32 %v1797, 1.442695
    %v1828 = vpow.pop %v1827
    %v1829 = vmul.f32 %v1798, 1.442695
    %v1830 = vpow.pop %v1829
    %1831 = vadd.xlane.f32.xlu0 %v1800
    %v1832 = vpop.xlane.xlu0 %1831
    %1833 = vadd.xlane.f32.xlu0 %v1802
    %v1834 = vpop.xlane.xlu0 %1833
    %1835 = vadd.xlane.f32.xlu0 %v1804
    %v1836 = vpop.xlane.xlu0 %1835
    %1837 = vadd.xlane.f32.xlu0 %v1806
    %v1838 = vpop.xlane.xlu0 %1837
    %1839 = vadd.xlane.f32.xlu0 %v1808
    %v1840 = vpop.xlane.xlu0 %1839
    %1841 = vadd.xlane.f32.xlu0 %v1810
    %v1842 = vpop.xlane.xlu0 %1841
    %1843 = vadd.xlane.f32.xlu0 %v1812
    %v1844 = vpop.xlane.xlu0 %1843
    %1845 = vadd.xlane.f32.xlu0 %v1814
    %v1846 = vpop.xlane.xlu0 %1845
    %1847 = vadd.xlane.f32.xlu0 %v1816
    %v1848 = vpop.xlane.xlu0 %1847
    %1849 = vadd.xlane.f32.xlu0 %v1818
    %v1850 = vpop.xlane.xlu0 %1849
    %1851 = vadd.xlane.f32.xlu0 %v1820
    %v1852 = vpop.xlane.xlu0 %1851
    %1853 = vadd.xlane.f32.xlu0 %v1822
    %v1854 = vpop.xlane.xlu0 %1853
    %1855 = vadd.xlane.f32.xlu0 %v1824
    %v1856 = vpop.xlane.xlu0 %1855
    %1857 = vadd.xlane.f32.xlu0 %v1826
    %v1858 = vpop.xlane.xlu0 %1857
    %1859 = vadd.xlane.f32.xlu0 %v1828
    %v1860 = vpop.xlane.xlu0 %1859
    %1861 = vadd.xlane.f32.xlu0 %v1830
    %v1862 = vpop.xlane.xlu0 %1861
    %v1863 = vadd.f32 %v1800, %v1802
    %v1864 = vadd.f32 %v1863, %v1804
    %v1865 = vadd.f32 %v1864, %v1806
    %v1866 = vadd.f32 %v1865, %v1808
    %v1867 = vadd.f32 %v1866, %v1810
    %v1868 = vadd.f32 %v1867, %v1812
    %v1869 = vadd.f32 %v1868, %v1814
    %v1870 = vadd.f32 %v1869, %v1816
    %v1871 = vadd.f32 %v1870, %v1818
    %v1872 = vadd.f32 %v1871, %v1820
    %v1873 = vadd.f32 %v1872, %v1822
    %v1874 = vadd.f32 %v1873, %v1824
    %v1875 = vadd.f32 %v1874, %v1826
    %v1876 = vadd.f32 %v1875, %v1828
    %v1877 = vadd.f32 %v1876, %v1830
    %v1878 = vrot.slane %v1877, 4
    %v1879 = vadd.f32 %v1877, %v1878
    %v1880 = vrot.slane %v1879, 2
    %v1881 = vadd.f32 %v1879, %v1880
    %v1882 = vrot.slane %v1881, 1
    %v1883 = vadd.f32 %v1881, %v1882
    %vm1884 = vcmp.gt.f32.partialorder %v1832, 0.0
    %vm1885 = vcmp.gt.f32.partialorder %v1834, 0.0
    %vm1886 = vcmp.gt.f32.partialorder %v1836, 0.0
    %vm1887 = vcmp.gt.f32.partialorder %v1838, 0.0
    %vm1888 = vcmp.gt.f32.partialorder %v1840, 0.0
    %vm1889 = vcmp.gt.f32.partialorder %v1842, 0.0
    %vm1890 = vcmp.gt.f32.partialorder %v1844, 0.0
    %vm1891 = vcmp.gt.f32.partialorder %v1846, 0.0
    %vm1892 = vcmp.gt.f32.partialorder %v1848, 0.0
    %vm1893 = vcmp.gt.f32.partialorder %v1850, 0.0
    %vm1894 = vcmp.gt.f32.partialorder %v1852, 0.0
    %vm1895 = vcmp.gt.f32.partialorder %v1854, 0.0
    %vm1896 = vcmp.gt.f32.partialorder %v1856, 0.0
    %vm1897 = vcmp.gt.f32.partialorder %v1858, 0.0
    %vm1898 = vcmp.gt.f32.partialorder %v1860, 0.0
    %vm1899 = vcmp.gt.f32.partialorder %v1862, 0.0
    %v1900 = vmax.f32 %v1832, 1e-37
    %v1901 = vmax.f32 %v1834, 1e-37
    %v1902 = vmax.f32 %v1836, 1e-37
    %v1903 = vmax.f32 %v1838, 1e-37
    %v1904 = vmax.f32 %v1840, 1e-37
    %v1905 = vmax.f32 %v1842, 1e-37
    %v1906 = vmax.f32 %v1844, 1e-37
    %v1907 = vmax.f32 %v1846, 1e-37
    %v1908 = vmax.f32 %v1848, 1e-37
    %v1909 = vmax.f32 %v1850, 1e-37
    %v1910 = vmax.f32 %v1852, 1e-37
    %v1911 = vmax.f32 %v1854, 1e-37
    %v1912 = vmax.f32 %v1856, 1e-37
    %v1913 = vmax.f32 %v1858, 1e-37
    %v1914 = vmax.f32 %v1860, 1e-37
    %v1915 = vmax.f32 %v1862, 1e-37
    %v1916 = vlog2.pop %v1900
    %v1917 = vmul.f32 %v1916, 0.6931472
    %v1918 = vlog2.pop %v1901
    %v1919 = vmul.f32 %v1918, 0.6931472
    %v1920 = vlog2.pop %v1902
    %v1921 = vmul.f32 %v1920, 0.6931472
    %v1922 = vlog2.pop %v1903
    %v1923 = vmul.f32 %v1922, 0.6931472
    %v1924 = vlog2.pop %v1904
    %v1925 = vmul.f32 %v1924, 0.6931472
    %v1926 = vlog2.pop %v1905
    %v1927 = vmul.f32 %v1926, 0.6931472
    %v1928 = vlog2.pop %v1906
    %v1929 = vmul.f32 %v1928, 0.6931472
    %v1930 = vlog2.pop %v1907
    %v1931 = vmul.f32 %v1930, 0.6931472
    %v1932 = vlog2.pop %v1908
    %v1933 = vmul.f32 %v1932, 0.6931472
    %v1934 = vlog2.pop %v1909
    %v1935 = vmul.f32 %v1934, 0.6931472
    %v1936 = vlog2.pop %v1910
    %v1937 = vmul.f32 %v1936, 0.6931472
    %v1938 = vlog2.pop %v1911
    %v1939 = vmul.f32 %v1938, 0.6931472
    %v1940 = vlog2.pop %v1912
    %v1941 = vmul.f32 %v1940, 0.6931472
    %v1942 = vlog2.pop %v1913
    %v1943 = vmul.f32 %v1942, 0.6931472
    %v1944 = vlog2.pop %v1914
    %v1945 = vmul.f32 %v1944, 0.6931472
    %v1946 = vlog2.pop %v1915
    %v1947 = vmul.f32 %v1946, 0.6931472
    %v1948 = vadd.f32 %v1782, %v1917
    %v1949 = vadd.f32 %v1782, %v1919
    %v1950 = vadd.f32 %v1782, %v1921
    %v1951 = vadd.f32 %v1782, %v1923
    %v1952 = vadd.f32 %v1782, %v1925
    %v1953 = vadd.f32 %v1782, %v1927
    %v1954 = vadd.f32 %v1782, %v1929
    %v1955 = vadd.f32 %v1782, %v1931
    %v1956 = vadd.f32 %v1782, %v1933
    %v1957 = vadd.f32 %v1782, %v1935
    %v1958 = vadd.f32 %v1782, %v1937
    %v1959 = vadd.f32 %v1782, %v1939
    %v1960 = vadd.f32 %v1782, %v1941
    %v1961 = vadd.f32 %v1782, %v1943
    %v1962 = vadd.f32 %v1782, %v1945
    %v1963 = vadd.f32 %v1782, %v1947
    %v1964 = vsel %vm1884, %v1948, 0.0
    %v1965 = vsel %vm1885, %v1949, 0.0
    %v1966 = vsel %vm1886, %v1950, 0.0
    %v1967 = vsel %vm1887, %v1951, 0.0
    %v1968 = vsel %vm1888, %v1952, 0.0
    %v1969 = vsel %vm1889, %v1953, 0.0
    %v1970 = vsel %vm1890, %v1954, 0.0
    %v1971 = vsel %vm1891, %v1955, 0.0
    %v1972 = vsel %vm1892, %v1956, 0.0
    %v1973 = vsel %vm1893, %v1957, 0.0
    %v1974 = vsel %vm1894, %v1958, 0.0
    %v1975 = vsel %vm1895, %v1959, 0.0
    %v1976 = vsel %vm1896, %v1960, 0.0
    %v1977 = vsel %vm1897, %v1961, 0.0
    %v1978 = vsel %vm1898, %v1962, 0.0
    %v1979 = vsel %vm1899, %v1963, 0.0
    %v1980 = vsel %vm748, %v1964, 0.0
    %v1981 = vsel %vm748, %v1965, 0.0
    %v1982 = vadd.f32 %v1980, %v1981
    %v1983 = vsel %vm748, %v1966, 0.0
    %v1984 = vadd.f32 %v1982, %v1983
    %v1985 = vsel %vm748, %v1967, 0.0
    %v1986 = vadd.f32 %v1984, %v1985
    %v1987 = vsel %vm748, %v1968, 0.0
    %v1988 = vadd.f32 %v1986, %v1987
    %v1989 = vsel %vm748, %v1969, 0.0
    %v1990 = vadd.f32 %v1988, %v1989
    %v1991 = vsel %vm748, %v1970, 0.0
    %v1992 = vadd.f32 %v1990, %v1991
    %v1993 = vsel %vm748, %v1971, 0.0
    %v1994 = vadd.f32 %v1992, %v1993
    %v1995 = vsel %vm748, %v1972, 0.0
    %v1996 = vadd.f32 %v1994, %v1995
    %v1997 = vsel %vm748, %v1973, 0.0
    %v1998 = vadd.f32 %v1996, %v1997
    %v1999 = vsel %vm748, %v1974, 0.0
    %v2000 = vadd.f32 %v1998, %v1999
    %v2001 = vsel %vm748, %v1975, 0.0
    %v2002 = vadd.f32 %v2000, %v2001
    %v2003 = vsel %vm748, %v1976, 0.0
    %v2004 = vadd.f32 %v2002, %v2003
    %v2005 = vsel %vm748, %v1977, 0.0
    %v2006 = vadd.f32 %v2004, %v2005
    %v2007 = vsel %vm748, %v1978, 0.0
    %v2008 = vadd.f32 %v2006, %v2007
    %v2009 = vsel %vm748, %v1979, 0.0
    %v2010 = vadd.f32 %v2008, %v2009
    %2011 = vadd.xlane.f32.xlu0 %v2010
    %v2012 = vpop.xlane.xlu0 %2011
    %v2013 = vrot.slane %v2012, 4
    %v2014 = vadd.f32 %v2012, %v2013
    %v2015 = vrot.slane %v2014, 2
    %v2016 = vadd.f32 %v2014, %v2015
    %v2017 = vrot.slane %v2016, 1
    %v2018 = vadd.f32 %v2016, %v2017
    %s2019 = vtos %v2018
    %vm2020 = vcmp.gt.f32.partialorder %v1883, 0.0
    %v2021 = vmax.f32 %v1883, 1e-37
    %v2022 = vlog2.pop %v2021
    %v2023 = vmul.f32 %v2022, 0.6931472
    %v2024 = vadd.f32 %v1782, %v2023
    %v2025 = vsel %vm2020, %v2024, 0.0
    %v2026 = vsel %vm795, %v2025, 0.0
    %2027 = vadd.xlane.f32.xlu0 %v2026
    %v2028 = vpop.xlane.xlu0 %2027
    %v2029 = vrot.slane %v2028, 4
    %v2030 = vadd.f32 %v2028, %v2029
    %v2031 = vrot.slane %v2030, 2
    %v2032 = vadd.f32 %v2030, %v2031
    %v2033 = vrot.slane %v2032, 1
    %v2034 = vadd.f32 %v2032, %v2033
    %s2035 = vtos %v2034
    %v2036 = vmul.f32 %v1565, %v169
    %v2037 = vmul.f32 %v1566, %v170
    %v2038 = vmul.f32 %v1567, %v171
    %v2039 = vmul.f32 %v1568, %v172
    %v2040 = vmul.f32 %v1569, %v173
    %v2041 = vmul.f32 %v1570, %v174
    %v2042 = vmul.f32 %v1571, %v175
    %v2043 = vmul.f32 %v1572, %v176
    %v2044 = vmul.f32 %v1573, %v177
    %v2045 = vmul.f32 %v1574, %v178
    %v2046 = vmul.f32 %v1575, %v179
    %v2047 = vmul.f32 %v1576, %v180
    %v2048 = vmul.f32 %v1577, %v181
    %v2049 = vmul.f32 %v1578, %v182
    %v2050 = vmul.f32 %v1579, %v183
    %v2051 = vmul.f32 %v1580, %v184
    %v2052 = vadd.f32 %v2036, %v2037
    %v2053 = vadd.f32 %v2052, %v2038
    %v2054 = vadd.f32 %v2053, %v2039
    %v2055 = vadd.f32 %v2054, %v2040
    %v2056 = vadd.f32 %v2055, %v2041
    %v2057 = vadd.f32 %v2056, %v2042
    %v2058 = vadd.f32 %v2057, %v2043
    %v2059 = vadd.f32 %v2058, %v2044
    %v2060 = vadd.f32 %v2059, %v2045
    %v2061 = vadd.f32 %v2060, %v2046
    %v2062 = vadd.f32 %v2061, %v2047
    %v2063 = vadd.f32 %v2062, %v2048
    %v2064 = vadd.f32 %v2063, %v2049
    %v2065 = vadd.f32 %v2064, %v2050
    %v2066 = vadd.f32 %v2065, %v2051
    %2067 = vadd.xlane.f32.xlu0 %v2066
    %v2068 = vpop.xlane.xlu0 %2067
    %v2069 = vrot.slane %v2068, 4
    %v2070 = vadd.f32 %v2068, %v2069
    %v2071 = vrot.slane %v2070, 2
    %v2072 = vadd.f32 %v2070, %v2071
    %v2073 = vrot.slane %v2072, 1
    %v2074 = vadd.f32 %v2072, %v2073
    %s2075 = vtos %v2074
    %s2076 = smul.f32 %s2075, 10.0
    %s2077 = sadd.f32 %s2019, %s2035
    %s2078 = smul.f32 %s2076, 2.0
    %s2079 = ssub.f32 %s2077, %s2078
    %v2080 = vrcp.pop 8.0
    %s2081 = vtos %v2080
    %s2082 = smul.f32 %s2079, %s2081
    %s2083 = sadd.f32 %s1468, %s2082
    %s2084 = scalar_lea.smem [#allocation10], 0
    %2085 = sst [smem:[%s2084]] %s2083
    // Predicated region
    $region34: #{tpu_custom_call.1} parent=1 // pred_check
      _
    $region35: #{tpu_custom_call.1} parent=1 // pred_check_branch
      %2087 = sbr.rel (0) target = $region37
    $region36: #{tpu_custom_call.1} parent=1 // pred_region
      %s2089 = ssub.s32 16, 16
      %2090 = vsyncadd [#allocation4], %s2089
      %2093 = dma.smem_to_hbm [#allocation10], 16, %s4, [#allocation4]
    $region37: #{tpu_custom_call.1} parent=1 // pred_fallthru
      _
    // Predicated region
    $region38: #{tpu_custom_call.1} parent=1 // pred_check
      _
    $region39: #{tpu_custom_call.1} parent=1 // pred_check_branch
      %2095 = sbr.rel (0) target = $region41
    $region40: #{tpu_custom_call.1} parent=1 // pred_region
      %2096 = dma.done [#allocation4], 16
    $region41: #{tpu_custom_call.1} parent=1 // pred_fallthru
      _
    %2097 = sfence
    %2098 = vsyncpa [#allocation3], 1
    %2099 = vsyncpa [#allocation6], 1
    %2100 = vsyncpa [#allocation9], 1
    %2101 = vsyncpa [#allocation4], 1

</llo_original>
